<compile_context>
chip_gen: v7x
topology: tpu7x:2x2x1
jax: 0.10.0
libtpu: 0.0.40
codegen_flags: <defaults>
</compile_context>

<pallas_src>
import jax
import jax.numpy as jnp
import numpy as np
from jax import lax
from jax.experimental import pallas as pl
from jax.experimental.pallas import tpu as pltpu

BIG = 1e7  # "no spike" latency marker (exactly representable in f32)


def make_stdp_kernel(T, To, C_in, H, W, C_out, KH, KW, Ho, Wo, num_winners,
                     lr_p=0.004, lr_n=-0.003, lower=0.0, upper=1.0,
                     use_stabilizer=True):
    CW = C_in * W        # lane-dense input row width
    CKW = C_in * KW      # lane width of one kh-slab of the flattened weight
    HoWo = Ho * Wo       # lane-dense output map width

    def kernel(winners_ref, in_spk_ref, out_spk_ref, w_ref, tgt_ref,
               new_w_ref, lr_ref):
        # ---- input latencies: running min over T of (t+1), BIG where no spike ----
        def in_body(t, lat):
            spk = in_spk_ref[t]                                  # (H, C_in*W)
            tt = (t + 1).astype(jnp.float32)
            return jnp.minimum(lat, jnp.where(spk != 0.0, tt, BIG))

        in_lat = lax.fori_loop(0, T, in_body,
                               jnp.full((H, CW), BIG, jnp.float32), unroll=True)

        # ---- output latencies: (first spike time + 1), 0 where no spike -----------
        def out_body(t, lat):
            spk = out_spk_ref[t]                                 # (C_out, Ho*Wo)
            tt = (t + 1).astype(jnp.float32)
            return jnp.minimum(lat, jnp.where(spk != 0.0, tt, BIG))

        first = lax.fori_loop(0, To, out_body,
                              jnp.full((C_out, HoWo), BIG, jnp.float32), unroll=True)
        out_lat = jnp.where(first < 0.5 * BIG, first, 0.0)

        # ---- hoisted iotas / constants (reused by every winner) --------------------
        feat_iota = lax.broadcasted_iota(jnp.int32, (C_out, HoWo), 0)
        pos_iota = lax.broadcasted_iota(jnp.int32, (C_out, HoWo), 1)
        kh_iota = lax.broadcasted_iota(jnp.int32, (KH, H), 0)
        h_iota = lax.broadcasted_iota(jnp.int32, (KH, H), 1)
        src_iota = lax.broadcasted_iota(jnp.int32, (CW, CKW), 0)
        tgt = tgt_ref[...]                                       # (1, C_in*KW) int32

        lr_p_f = jnp.float32(lr_p)
        lr_n_f = jnp.float32(lr_n)

        lr_ref[...] = jnp.zeros_like(lr_ref)

        for i in range(num_winners):
            f = winners_ref[3 * i + 0]
            rr = winners_ref[3 * i + 1]
            cc = winners_ref[3 * i + 2]

            # output latency at the winner position: one lane-dense masked reduce
            sel = (feat_iota == f) & (pos_iota == (rr * Wo + cc))
            out_val = jnp.sum(jnp.where(sel, out_lat, 0.0))

            # gather the (KH, C_in*KW) input-latency patch with 2 small matmuls:
            #   rows  picks input rows [rr, rr+KH)           (KH, H)  @ (H, C_in*W)
            #   cols  picks columns [cc, cc+KW) per channel  (C_in*W, C_in*KW)
            rows = (h_iota == (kh_iota + rr)).astype(jnp.float32)
            cols = (src_iota == (tgt + cc)).astype(jnp.float32)
            block = jnp.dot(rows, in_lat, preferred_element_type=jnp.float32)
            patch = jnp.dot(block, cols, preferred_element_type=jnp.float32)

            # pre-then-post (or concurrent) -> lr_p else lr_n; single store per winner
            lr_ref[f] = jnp.where(patch <= out_val, lr_p_f, lr_n_f)

        # ---- STDP weight update (stabilizer + clamp) -------------------------------
        w = w_ref[...]
        lr = lr_ref[...]
        if use_stabilizer:
            upd = w + lr * ((w - lower) * (upper - w))
        else:
            upd = w + lr
        new_w_ref[...] = jnp.clip(upd, lower, upper)

    grid_spec = pltpu.PrefetchScalarGridSpec(
        num_scalar_prefetch=1,
        grid=(1,),
        in_specs=[
            pl.BlockSpec((T, H, CW), lambda i, wn: (0, 0, 0)),
            pl.BlockSpec((To, C_out, HoWo), lambda i, wn: (0, 0, 0)),
            pl.BlockSpec((C_out, KH, CKW), lambda i, wn: (0, 0, 0)),
            pl.BlockSpec((1, CKW), lambda i, wn: (0, 0)),        # column-gather table
        ],
        out_specs=pl.BlockSpec((C_out, KH, CKW), lambda i, wn: (0, 0, 0)),
        scratch_shapes=[
            pltpu.VMEM((C_out, KH, CKW), jnp.float32),   # lr tensor
        ],
    )

    return pl.pallas_call(
        kernel,
        out_shape=jax.ShapeDtypeStruct((C_out, KH, CKW), jnp.float32),
        grid_spec=grid_spec,
        compiler_params=pltpu.CompilerParams(dimension_semantics=("arbitrary",)),
    )


def stdp_forward(input_spikes, output_spikes, weight, winners,
                 lr_p=0.004, lr_n=-0.003, lower=0.0, upper=1.0,
                 use_stabilizer=True):
    """input_spikes (T,Cin,H,W), output_spikes (T,Cout,Ho,Wo), weight (Cout,Cin,KH,KW),
    winners int32 (NW,3) of (feature,row,col). Returns the updated conv weight."""
    T, C_in, H, W = input_spikes.shape
    To, C_out_o, Ho, Wo = output_spikes.shape
    C_out, _, KH, KW = weight.shape
    num_winners = winners.shape[0]
    CKW = C_in * KW

    fn = make_stdp_kernel(T, To, C_in, H, W, C_out, KH, KW, Ho, Wo, num_winners,
                          lr_p, lr_n, lower, upper, use_stabilizer)

    # lane-dense kernel views (cheap XLA-side layout plumbing)
    in_k = jnp.transpose(input_spikes.astype(jnp.float32),
                         (0, 2, 1, 3)).reshape(T, H, C_in * W)        # (T,H,Cin*W)
    out_k = output_spikes.astype(jnp.float32).reshape(To, C_out_o, Ho * Wo)
    w_k = jnp.transpose(weight.astype(jnp.float32),
                        (0, 2, 1, 3)).reshape(C_out, KH, CKW)         # (Cout,KH,Cin*KW)

    # static column-gather targets: flattened kernel column q = ci*KW + kw reads input
    # lane ci*W + kw (+ cc at runtime); passed as an input (no captured constants).
    q = np.arange(CKW)
    tgt = jnp.asarray(((q // KW) * W + (q % KW)).astype(np.int32).reshape(1, CKW))

    new_w_k = fn(winners.reshape(-1).astype(jnp.int32), in_k, out_k, w_k, tgt)

    return jnp.transpose(new_w_k.reshape(C_out, KH, C_in, KW), (0, 2, 1, 3))


def stdp_reference(input_spikes, output_spikes, weight, winners_list,
                   lr_p=0.004, lr_n=-0.003, lower=0.0, upper=1.0,
                   use_stabilizer=True):
    """Pure-JAX mirror of the PyTorch forward (for verification)."""
    T = input_spikes.shape[0]
    t = jnp.arange(1, T + 1, dtype=jnp.float32)[:, None, None, None]
    coded = input_spikes * t
    coded = jnp.where(coded == 0.0, BIG, coded)
    in_lat = jnp.min(coded, axis=0)

    To = output_spikes.shape[0]
    t2 = jnp.arange(1, To + 1, dtype=jnp.float32)[:, None, None, None]
    coded_o = jnp.where(output_spikes != 0.0, t2, BIG)
    first = jnp.min(coded_o, axis=0)
    out_lat = jnp.where(first < 0.5 * BIG, first, 0.0)

    KH, KW = weight.shape[2], weight.shape[3]
    lr = jnp.zeros_like(weight)
    for (f, r, c) in winners_list:
        out_val = out_lat[f, r, c]
        patch = in_lat[:, r:r + KH, c:c + KW]
        pair = patch <= out_val
        lr = lr.at[f].set(jnp.where(pair, jnp.float32(lr_p), jnp.float32(lr_n)))
    if use_stabilizer:
        upd = weight + lr * ((weight - lower) * (upper - weight))
    else:
        upd = weight + lr
    return jnp.clip(upd, lower, upper)


if __name__ == "__main__":
    T, C_in, H, W = 8, 4, 16, 16
    C_out, KH, KW = 8, 5, 5
    Ho, Wo = H - KH + 1, W - KW + 1

    key = jax.random.PRNGKey(0)
    k1, k2, k3 = jax.random.split(key, 3)
    input_spikes = (jax.random.uniform(k1, (T, C_in, H, W)) < 0.25).astype(jnp.float32)
    output_spikes = (jax.random.uniform(k2, (T, C_out, Ho, Wo)) < 0.15).astype(jnp.float32)
    weight = jax.random.uniform(k3, (C_out, C_in, KH, KW), dtype=jnp.float32)

    winners_list = [(1, 3, 7), (5, 0, 2), (1, 10, 11)]   # (feature, row, col)
    winners = jnp.array(winners_list, dtype=jnp.int32)

    new_w = stdp_forward(input_spikes, output_spikes, weight, winners)
    new_w = jax.block_until_ready(new_w)

    ref_w = stdp_reference(input_spikes, output_spikes, weight, winners_list)
    np.testing.assert_allclose(np.asarray(new_w), np.asarray(ref_w),
                               atol=1e-6, rtol=1e-6)
    print("KERNEL_OK")
</pallas_src>

<mosaic_0001>
module attributes {stable_mosaic.version = 11 : i64} {
  func.func @kernel(%arg0: i32, %arg1: memref<9xi32, #tpu.memory_space<smem>>, %arg2: memref<8x16x64xf32, #tpu.memory_space<vmem>>, %arg3: memref<8x8x144xf32, #tpu.memory_space<vmem>>, %arg4: memref<8x5x20xf32, #tpu.memory_space<vmem>>, %arg5: memref<1x20xi32, #tpu.memory_space<vmem>>, %arg6: memref<8x5x20xf32, #tpu.memory_space<vmem>>, %arg7: memref<8x5x20xf32, #tpu.memory_space<vmem>>) attributes {dimension_semantics = [#tpu.dimension_semantics<arbitrary>], iteration_bounds = array<i64: 1>, scalar_prefetch = 1 : i64, scratch_operands = 1 : i64, tpu.core_type = #tpu.core_type<tc>, window_params = [{pipeline_mode = #tpu.pipeline_mode<synchronous>, transform_indices = @transform_0, window_bounds = array<i64: 8, 16, 64>}, {pipeline_mode = #tpu.pipeline_mode<synchronous>, transform_indices = @transform_1, window_bounds = array<i64: 8, 8, 144>}, {pipeline_mode = #tpu.pipeline_mode<synchronous>, transform_indices = @transform_2, window_bounds = array<i64: 8, 5, 20>}, {pipeline_mode = #tpu.pipeline_mode<synchronous>, transform_indices = @transform_3, window_bounds = array<i64: 1, 20>}, {pipeline_mode = #tpu.pipeline_mode<synchronous>, transform_indices = @transform_4, window_bounds = array<i64: 8, 5, 20>}]} {
    %cst = arith.constant 1.000000e+07 : f32
    %0 = vector.broadcast %cst : f32 to vector<16x64xf32>
    %c0_i32 = arith.constant 0 : i32
    %1 = arith.index_cast %c0_i32 : i32 to index
    %c0 = arith.constant 0 : index
    %c0_0 = arith.constant 0 : index
    %2 = vector.load %arg2[%1, %c0, %c0_0] : memref<8x16x64xf32, #tpu.memory_space<vmem>>, vector<1x16x64xf32>
    %3 = vector.shape_cast %2 : vector<1x16x64xf32> to vector<16x64xf32>
    %c1_i32 = arith.constant 1 : i32
    %4 = arith.addi %c0_i32, %c1_i32 : i32
    %5 = arith.sitofp %4 : i32 to f32
    %cst_1 = arith.constant 0.000000e+00 : f32
    %6 = vector.broadcast %cst_1 : f32 to vector<16x64xf32>
    %7 = arith.cmpf one, %3, %6 : vector<16x64xf32>
    %cst_2 = arith.constant 1.000000e+07 : f32
    %8 = vector.broadcast %5 : f32 to vector<16x64xf32>
    %9 = vector.broadcast %cst_2 : f32 to vector<16x64xf32>
    %10 = arith.select %7, %8, %9 : vector<16x64xi1>, vector<16x64xf32>
    %11 = arith.minimumf %0, %10 : vector<16x64xf32>
    %c1_i32_3 = arith.constant 1 : i32
    %12 = arith.index_cast %c1_i32_3 : i32 to index
    %c0_4 = arith.constant 0 : index
    %c0_5 = arith.constant 0 : index
    %13 = vector.load %arg2[%12, %c0_4, %c0_5] : memref<8x16x64xf32, #tpu.memory_space<vmem>>, vector<1x16x64xf32>
    %14 = vector.shape_cast %13 : vector<1x16x64xf32> to vector<16x64xf32>
    %c1_i32_6 = arith.constant 1 : i32
    %15 = arith.addi %c1_i32_3, %c1_i32_6 : i32
    %16 = arith.sitofp %15 : i32 to f32
    %cst_7 = arith.constant 0.000000e+00 : f32
    %17 = vector.broadcast %cst_7 : f32 to vector<16x64xf32>
    %18 = arith.cmpf one, %14, %17 : vector<16x64xf32>
    %cst_8 = arith.constant 1.000000e+07 : f32
    %19 = vector.broadcast %16 : f32 to vector<16x64xf32>
    %20 = vector.broadcast %cst_8 : f32 to vector<16x64xf32>
    %21 = arith.select %18, %19, %20 : vector<16x64xi1>, vector<16x64xf32>
    %22 = arith.minimumf %11, %21 : vector<16x64xf32>
    %c2_i32 = arith.constant 2 : i32
    %23 = arith.index_cast %c2_i32 : i32 to index
    %c0_9 = arith.constant 0 : index
    %c0_10 = arith.constant 0 : index
    %24 = vector.load %arg2[%23, %c0_9, %c0_10] : memref<8x16x64xf32, #tpu.memory_space<vmem>>, vector<1x16x64xf32>
    %25 = vector.shape_cast %24 : vector<1x16x64xf32> to vector<16x64xf32>
    %c1_i32_11 = arith.constant 1 : i32
    %26 = arith.addi %c2_i32, %c1_i32_11 : i32
    %27 = arith.sitofp %26 : i32 to f32
    %cst_12 = arith.constant 0.000000e+00 : f32
    %28 = vector.broadcast %cst_12 : f32 to vector<16x64xf32>
    %29 = arith.cmpf one, %25, %28 : vector<16x64xf32>
    %cst_13 = arith.constant 1.000000e+07 : f32
    %30 = vector.broadcast %27 : f32 to vector<16x64xf32>
    %31 = vector.broadcast %cst_13 : f32 to vector<16x64xf32>
    %32 = arith.select %29, %30, %31 : vector<16x64xi1>, vector<16x64xf32>
    %33 = arith.minimumf %22, %32 : vector<16x64xf32>
    %c3_i32 = arith.constant 3 : i32
    %34 = arith.index_cast %c3_i32 : i32 to index
    %c0_14 = arith.constant 0 : index
    %c0_15 = arith.constant 0 : index
    %35 = vector.load %arg2[%34, %c0_14, %c0_15] : memref<8x16x64xf32, #tpu.memory_space<vmem>>, vector<1x16x64xf32>
    %36 = vector.shape_cast %35 : vector<1x16x64xf32> to vector<16x64xf32>
    %c1_i32_16 = arith.constant 1 : i32
    %37 = arith.addi %c3_i32, %c1_i32_16 : i32
    %38 = arith.sitofp %37 : i32 to f32
    %cst_17 = arith.constant 0.000000e+00 : f32
    %39 = vector.broadcast %cst_17 : f32 to vector<16x64xf32>
    %40 = arith.cmpf one, %36, %39 : vector<16x64xf32>
    %cst_18 = arith.constant 1.000000e+07 : f32
    %41 = vector.broadcast %38 : f32 to vector<16x64xf32>
    %42 = vector.broadcast %cst_18 : f32 to vector<16x64xf32>
    %43 = arith.select %40, %41, %42 : vector<16x64xi1>, vector<16x64xf32>
    %44 = arith.minimumf %33, %43 : vector<16x64xf32>
    %c4_i32 = arith.constant 4 : i32
    %45 = arith.index_cast %c4_i32 : i32 to index
    %c0_19 = arith.constant 0 : index
    %c0_20 = arith.constant 0 : index
    %46 = vector.load %arg2[%45, %c0_19, %c0_20] : memref<8x16x64xf32, #tpu.memory_space<vmem>>, vector<1x16x64xf32>
    %47 = vector.shape_cast %46 : vector<1x16x64xf32> to vector<16x64xf32>
    %c1_i32_21 = arith.constant 1 : i32
    %48 = arith.addi %c4_i32, %c1_i32_21 : i32
    %49 = arith.sitofp %48 : i32 to f32
    %cst_22 = arith.constant 0.000000e+00 : f32
    %50 = vector.broadcast %cst_22 : f32 to vector<16x64xf32>
    %51 = arith.cmpf one, %47, %50 : vector<16x64xf32>
    %cst_23 = arith.constant 1.000000e+07 : f32
    %52 = vector.broadcast %49 : f32 to vector<16x64xf32>
    %53 = vector.broadcast %cst_23 : f32 to vector<16x64xf32>
    %54 = arith.select %51, %52, %53 : vector<16x64xi1>, vector<16x64xf32>
    %55 = arith.minimumf %44, %54 : vector<16x64xf32>
    %c5_i32 = arith.constant 5 : i32
    %56 = arith.index_cast %c5_i32 : i32 to index
    %c0_24 = arith.constant 0 : index
    %c0_25 = arith.constant 0 : index
    %57 = vector.load %arg2[%56, %c0_24, %c0_25] : memref<8x16x64xf32, #tpu.memory_space<vmem>>, vector<1x16x64xf32>
    %58 = vector.shape_cast %57 : vector<1x16x64xf32> to vector<16x64xf32>
    %c1_i32_26 = arith.constant 1 : i32
    %59 = arith.addi %c5_i32, %c1_i32_26 : i32
    %60 = arith.sitofp %59 : i32 to f32
    %cst_27 = arith.constant 0.000000e+00 : f32
    %61 = vector.broadcast %cst_27 : f32 to vector<16x64xf32>
    %62 = arith.cmpf one, %58, %61 : vector<16x64xf32>
    %cst_28 = arith.constant 1.000000e+07 : f32
    %63 = vector.broadcast %60 : f32 to vector<16x64xf32>
    %64 = vector.broadcast %cst_28 : f32 to vector<16x64xf32>
    %65 = arith.select %62, %63, %64 : vector<16x64xi1>, vector<16x64xf32>
    %66 = arith.minimumf %55, %65 : vector<16x64xf32>
    %c6_i32 = arith.constant 6 : i32
    %67 = arith.index_cast %c6_i32 : i32 to index
    %c0_29 = arith.constant 0 : index
    %c0_30 = arith.constant 0 : index
    %68 = vector.load %arg2[%67, %c0_29, %c0_30] : memref<8x16x64xf32, #tpu.memory_space<vmem>>, vector<1x16x64xf32>
    %69 = vector.shape_cast %68 : vector<1x16x64xf32> to vector<16x64xf32>
    %c1_i32_31 = arith.constant 1 : i32
    %70 = arith.addi %c6_i32, %c1_i32_31 : i32
    %71 = arith.sitofp %70 : i32 to f32
    %cst_32 = arith.constant 0.000000e+00 : f32
    %72 = vector.broadcast %cst_32 : f32 to vector<16x64xf32>
    %73 = arith.cmpf one, %69, %72 : vector<16x64xf32>
    %cst_33 = arith.constant 1.000000e+07 : f32
    %74 = vector.broadcast %71 : f32 to vector<16x64xf32>
    %75 = vector.broadcast %cst_33 : f32 to vector<16x64xf32>
    %76 = arith.select %73, %74, %75 : vector<16x64xi1>, vector<16x64xf32>
    %77 = arith.minimumf %66, %76 : vector<16x64xf32>
    %c7_i32 = arith.constant 7 : i32
    %78 = arith.index_cast %c7_i32 : i32 to index
    %c0_34 = arith.constant 0 : index
    %c0_35 = arith.constant 0 : index
    %79 = vector.load %arg2[%78, %c0_34, %c0_35] : memref<8x16x64xf32, #tpu.memory_space<vmem>>, vector<1x16x64xf32>
    %80 = vector.shape_cast %79 : vector<1x16x64xf32> to vector<16x64xf32>
    %c1_i32_36 = arith.constant 1 : i32
    %81 = arith.addi %c7_i32, %c1_i32_36 : i32
    %82 = arith.sitofp %81 : i32 to f32
    %cst_37 = arith.constant 0.000000e+00 : f32
    %83 = vector.broadcast %cst_37 : f32 to vector<16x64xf32>
    %84 = arith.cmpf one, %80, %83 : vector<16x64xf32>
    %cst_38 = arith.constant 1.000000e+07 : f32
    %85 = vector.broadcast %82 : f32 to vector<16x64xf32>
    %86 = vector.broadcast %cst_38 : f32 to vector<16x64xf32>
    %87 = arith.select %84, %85, %86 : vector<16x64xi1>, vector<16x64xf32>
    %88 = arith.minimumf %77, %87 : vector<16x64xf32>
    %c8_i32 = arith.constant 8 : i32
    %cst_39 = arith.constant 1.000000e+07 : f32
    %89 = vector.broadcast %cst_39 : f32 to vector<8x144xf32>
    %c0_i32_40 = arith.constant 0 : i32
    %90 = arith.index_cast %c0_i32_40 : i32 to index
    %c0_41 = arith.constant 0 : index
    %c0_42 = arith.constant 0 : index
    %91 = vector.load %arg3[%90, %c0_41, %c0_42] : memref<8x8x144xf32, #tpu.memory_space<vmem>>, vector<1x8x144xf32>
    %92 = vector.shape_cast %91 : vector<1x8x144xf32> to vector<8x144xf32>
    %c1_i32_43 = arith.constant 1 : i32
    %93 = arith.addi %c0_i32_40, %c1_i32_43 : i32
    %94 = arith.sitofp %93 : i32 to f32
    %cst_44 = arith.constant 0.000000e+00 : f32
    %95 = vector.broadcast %cst_44 : f32 to vector<8x144xf32>
    %96 = arith.cmpf one, %92, %95 : vector<8x144xf32>
    %cst_45 = arith.constant 1.000000e+07 : f32
    %97 = vector.broadcast %94 : f32 to vector<8x144xf32>
    %98 = vector.broadcast %cst_45 : f32 to vector<8x144xf32>
    %99 = arith.select %96, %97, %98 : vector<8x144xi1>, vector<8x144xf32>
    %100 = arith.minimumf %89, %99 : vector<8x144xf32>
    %c1_i32_46 = arith.constant 1 : i32
    %101 = arith.index_cast %c1_i32_46 : i32 to index
    %c0_47 = arith.constant 0 : index
    %c0_48 = arith.constant 0 : index
    %102 = vector.load %arg3[%101, %c0_47, %c0_48] : memref<8x8x144xf32, #tpu.memory_space<vmem>>, vector<1x8x144xf32>
    %103 = vector.shape_cast %102 : vector<1x8x144xf32> to vector<8x144xf32>
    %c1_i32_49 = arith.constant 1 : i32
    %104 = arith.addi %c1_i32_46, %c1_i32_49 : i32
    %105 = arith.sitofp %104 : i32 to f32
    %cst_50 = arith.constant 0.000000e+00 : f32
    %106 = vector.broadcast %cst_50 : f32 to vector<8x144xf32>
    %107 = arith.cmpf one, %103, %106 : vector<8x144xf32>
    %cst_51 = arith.constant 1.000000e+07 : f32
    %108 = vector.broadcast %105 : f32 to vector<8x144xf32>
    %109 = vector.broadcast %cst_51 : f32 to vector<8x144xf32>
    %110 = arith.select %107, %108, %109 : vector<8x144xi1>, vector<8x144xf32>
    %111 = arith.minimumf %100, %110 : vector<8x144xf32>
    %c2_i32_52 = arith.constant 2 : i32
    %112 = arith.index_cast %c2_i32_52 : i32 to index
    %c0_53 = arith.constant 0 : index
    %c0_54 = arith.constant 0 : index
    %113 = vector.load %arg3[%112, %c0_53, %c0_54] : memref<8x8x144xf32, #tpu.memory_space<vmem>>, vector<1x8x144xf32>
    %114 = vector.shape_cast %113 : vector<1x8x144xf32> to vector<8x144xf32>
    %c1_i32_55 = arith.constant 1 : i32
    %115 = arith.addi %c2_i32_52, %c1_i32_55 : i32
    %116 = arith.sitofp %115 : i32 to f32
    %cst_56 = arith.constant 0.000000e+00 : f32
    %117 = vector.broadcast %cst_56 : f32 to vector<8x144xf32>
    %118 = arith.cmpf one, %114, %117 : vector<8x144xf32>
    %cst_57 = arith.constant 1.000000e+07 : f32
    %119 = vector.broadcast %116 : f32 to vector<8x144xf32>
    %120 = vector.broadcast %cst_57 : f32 to vector<8x144xf32>
    %121 = arith.select %118, %119, %120 : vector<8x144xi1>, vector<8x144xf32>
    %122 = arith.minimumf %111, %121 : vector<8x144xf32>
    %c3_i32_58 = arith.constant 3 : i32
    %123 = arith.index_cast %c3_i32_58 : i32 to index
    %c0_59 = arith.constant 0 : index
    %c0_60 = arith.constant 0 : index
    %124 = vector.load %arg3[%123, %c0_59, %c0_60] : memref<8x8x144xf32, #tpu.memory_space<vmem>>, vector<1x8x144xf32>
    %125 = vector.shape_cast %124 : vector<1x8x144xf32> to vector<8x144xf32>
    %c1_i32_61 = arith.constant 1 : i32
    %126 = arith.addi %c3_i32_58, %c1_i32_61 : i32
    %127 = arith.sitofp %126 : i32 to f32
    %cst_62 = arith.constant 0.000000e+00 : f32
    %128 = vector.broadcast %cst_62 : f32 to vector<8x144xf32>
    %129 = arith.cmpf one, %125, %128 : vector<8x144xf32>
    %cst_63 = arith.constant 1.000000e+07 : f32
    %130 = vector.broadcast %127 : f32 to vector<8x144xf32>
    %131 = vector.broadcast %cst_63 : f32 to vector<8x144xf32>
    %132 = arith.select %129, %130, %131 : vector<8x144xi1>, vector<8x144xf32>
    %133 = arith.minimumf %122, %132 : vector<8x144xf32>
    %c4_i32_64 = arith.constant 4 : i32
    %134 = arith.index_cast %c4_i32_64 : i32 to index
    %c0_65 = arith.constant 0 : index
    %c0_66 = arith.constant 0 : index
    %135 = vector.load %arg3[%134, %c0_65, %c0_66] : memref<8x8x144xf32, #tpu.memory_space<vmem>>, vector<1x8x144xf32>
    %136 = vector.shape_cast %135 : vector<1x8x144xf32> to vector<8x144xf32>
    %c1_i32_67 = arith.constant 1 : i32
    %137 = arith.addi %c4_i32_64, %c1_i32_67 : i32
    %138 = arith.sitofp %137 : i32 to f32
    %cst_68 = arith.constant 0.000000e+00 : f32
    %139 = vector.broadcast %cst_68 : f32 to vector<8x144xf32>
    %140 = arith.cmpf one, %136, %139 : vector<8x144xf32>
    %cst_69 = arith.constant 1.000000e+07 : f32
    %141 = vector.broadcast %138 : f32 to vector<8x144xf32>
    %142 = vector.broadcast %cst_69 : f32 to vector<8x144xf32>
    %143 = arith.select %140, %141, %142 : vector<8x144xi1>, vector<8x144xf32>
    %144 = arith.minimumf %133, %143 : vector<8x144xf32>
    %c5_i32_70 = arith.constant 5 : i32
    %145 = arith.index_cast %c5_i32_70 : i32 to index
    %c0_71 = arith.constant 0 : index
    %c0_72 = arith.constant 0 : index
    %146 = vector.load %arg3[%145, %c0_71, %c0_72] : memref<8x8x144xf32, #tpu.memory_space<vmem>>, vector<1x8x144xf32>
    %147 = vector.shape_cast %146 : vector<1x8x144xf32> to vector<8x144xf32>
    %c1_i32_73 = arith.constant 1 : i32
    %148 = arith.addi %c5_i32_70, %c1_i32_73 : i32
    %149 = arith.sitofp %148 : i32 to f32
    %cst_74 = arith.constant 0.000000e+00 : f32
    %150 = vector.broadcast %cst_74 : f32 to vector<8x144xf32>
    %151 = arith.cmpf one, %147, %150 : vector<8x144xf32>
    %cst_75 = arith.constant 1.000000e+07 : f32
    %152 = vector.broadcast %149 : f32 to vector<8x144xf32>
    %153 = vector.broadcast %cst_75 : f32 to vector<8x144xf32>
    %154 = arith.select %151, %152, %153 : vector<8x144xi1>, vector<8x144xf32>
    %155 = arith.minimumf %144, %154 : vector<8x144xf32>
    %c6_i32_76 = arith.constant 6 : i32
    %156 = arith.index_cast %c6_i32_76 : i32 to index
    %c0_77 = arith.constant 0 : index
    %c0_78 = arith.constant 0 : index
    %157 = vector.load %arg3[%156, %c0_77, %c0_78] : memref<8x8x144xf32, #tpu.memory_space<vmem>>, vector<1x8x144xf32>
    %158 = vector.shape_cast %157 : vector<1x8x144xf32> to vector<8x144xf32>
    %c1_i32_79 = arith.constant 1 : i32
    %159 = arith.addi %c6_i32_76, %c1_i32_79 : i32
    %160 = arith.sitofp %159 : i32 to f32
    %cst_80 = arith.constant 0.000000e+00 : f32
    %161 = vector.broadcast %cst_80 : f32 to vector<8x144xf32>
    %162 = arith.cmpf one, %158, %161 : vector<8x144xf32>
    %cst_81 = arith.constant 1.000000e+07 : f32
    %163 = vector.broadcast %160 : f32 to vector<8x144xf32>
    %164 = vector.broadcast %cst_81 : f32 to vector<8x144xf32>
    %165 = arith.select %162, %163, %164 : vector<8x144xi1>, vector<8x144xf32>
    %166 = arith.minimumf %155, %165 : vector<8x144xf32>
    %c7_i32_82 = arith.constant 7 : i32
    %167 = arith.index_cast %c7_i32_82 : i32 to index
    %c0_83 = arith.constant 0 : index
    %c0_84 = arith.constant 0 : index
    %168 = vector.load %arg3[%167, %c0_83, %c0_84] : memref<8x8x144xf32, #tpu.memory_space<vmem>>, vector<1x8x144xf32>
    %169 = vector.shape_cast %168 : vector<1x8x144xf32> to vector<8x144xf32>
    %c1_i32_85 = arith.constant 1 : i32
    %170 = arith.addi %c7_i32_82, %c1_i32_85 : i32
    %171 = arith.sitofp %170 : i32 to f32
    %cst_86 = arith.constant 0.000000e+00 : f32
    %172 = vector.broadcast %cst_86 : f32 to vector<8x144xf32>
    %173 = arith.cmpf one, %169, %172 : vector<8x144xf32>
    %cst_87 = arith.constant 1.000000e+07 : f32
    %174 = vector.broadcast %171 : f32 to vector<8x144xf32>
    %175 = vector.broadcast %cst_87 : f32 to vector<8x144xf32>
    %176 = arith.select %173, %174, %175 : vector<8x144xi1>, vector<8x144xf32>
    %177 = arith.minimumf %166, %176 : vector<8x144xf32>
    %c8_i32_88 = arith.constant 8 : i32
    %cst_89 = arith.constant 5.000000e+06 : f32
    %178 = vector.broadcast %cst_89 : f32 to vector<8x144xf32>
    %179 = arith.cmpf olt, %177, %178 : vector<8x144xf32>
    %cst_90 = arith.constant 0.000000e+00 : f32
    %180 = vector.broadcast %cst_90 : f32 to vector<8x144xf32>
    %181 = arith.select %179, %177, %180 : vector<8x144xi1>, vector<8x144xf32>
    %182 = tpu.iota {dimensions = array<i32: 0>} : vector<8x144xi32>
    %183 = tpu.iota {dimensions = array<i32: 1>} : vector<8x144xi32>
    %184 = tpu.iota {dimensions = array<i32: 0>} : vector<5x16xi32>
    %185 = tpu.iota {dimensions = array<i32: 1>} : vector<5x16xi32>
    %186 = tpu.iota {dimensions = array<i32: 0>} : vector<64x20xi32>
    %c0_91 = arith.constant 0 : index
    %c0_92 = arith.constant 0 : index
    %187 = vector.load %arg5[%c0_91, %c0_92] : memref<1x20xi32, #tpu.memory_space<vmem>>, vector<1x20xi32>
    %cst_93 = arith.constant 0.000000e+00 : f32
    %188 = vector.broadcast %cst_93 : f32 to vector<8x5x20xf32>
    %c0_94 = arith.constant 0 : index
    %c0_95 = arith.constant 0 : index
    %c0_96 = arith.constant 0 : index
    %189 = vector.load %arg7[%c0_94, %c0_95, %c0_96] : memref<8x5x20xf32, #tpu.memory_space<vmem>>, vector<8x5x20xf32>
    tpu.vector_store %arg7[%c0_94, %c0_95, %c0_96], %188 {strides = array<i32>} : memref<8x5x20xf32, #tpu.memory_space<vmem>>, vector<8x5x20xf32>,
    %c0_97 = arith.constant 0 : index
    %190 = memref.load %arg1[%c0_97] : memref<9xi32, #tpu.memory_space<smem>>
    %c1 = arith.constant 1 : index
    %191 = memref.load %arg1[%c1] : memref<9xi32, #tpu.memory_space<smem>>
    %c2 = arith.constant 2 : index
    %192 = memref.load %arg1[%c2] : memref<9xi32, #tpu.memory_space<smem>>
    %193 = vector.broadcast %190 : i32 to vector<8x144xi32>
    %194 = arith.cmpi eq, %182, %193 : vector<8x144xi32>
    %c12_i32 = arith.constant 12 : i32
    %195 = arith.muli %191, %c12_i32 : i32
    %196 = arith.addi %195, %192 : i32
    %197 = vector.broadcast %196 : i32 to vector<8x144xi32>
    %198 = arith.cmpi eq, %183, %197 : vector<8x144xi32>
    %199 = arith.andi %194, %198 : vector<8x144xi1>
    %cst_98 = arith.constant 0.000000e+00 : f32
    %200 = vector.broadcast %cst_98 : f32 to vector<8x144xf32>
    %201 = arith.select %199, %181, %200 : vector<8x144xi1>, vector<8x144xf32>
    %202 = vector.shape_cast %201 : vector<8x144xf32> to vector<1x8x144xf32>
    %cst_99 = arith.constant dense<0.000000e+00> : vector<1xf32>
    %203 = vector.multi_reduction <add>, %202, %cst_99 [1, 2] : vector<1x8x144xf32> to vector<1xf32>
    %204 = vector.shape_cast %203 : vector<1xf32> to vector<1x1x1xf32>
    %205 = vector.extract %204[0, 0, 0] : f32 from vector<1x1x1xf32>
    %206 = vector.broadcast %191 : i32 to vector<5x16xi32>
    %207 = arith.addi %184, %206 : vector<5x16xi32>
    %208 = arith.cmpi eq, %185, %207 : vector<5x16xi32>
    %209 = arith.extui %208 : vector<5x16xi1> to vector<5x16xi32>
    %210 = arith.sitofp %209 : vector<5x16xi32> to vector<5x16xf32>
    %211 = vector.broadcast %192 : i32 to vector<1x20xi32>
    %212 = arith.addi %187, %211 : vector<1x20xi32>
    %213 = vector.broadcast %212 : vector<1x20xi32> to vector<64x20xi32>
    %214 = arith.cmpi eq, %186, %213 : vector<64x20xi32>
    %215 = arith.extui %214 : vector<64x20xi1> to vector<64x20xi32>
    %216 = arith.sitofp %215 : vector<64x20xi32> to vector<64x20xf32>
    %cst_100 = arith.constant dense<0.000000e+00> : vector<5x64xf32>
    %217 = tpu.matmul %210, %88, %cst_100 {dimension_numbers = #tpu.dot_dimension_numbers<[1], [0], [0], [1], [0, 0, 1, 1], [], []>} : vector<5x16xf32>, vector<16x64xf32>, vector<5x64xf32> -> vector<5x64xf32>
    %cst_101 = arith.constant dense<0.000000e+00> : vector<5x20xf32>
    %218 = tpu.matmul %217, %216, %cst_101 {dimension_numbers = #tpu.dot_dimension_numbers<[1], [0], [0], [1], [0, 0, 1, 1], [], []>} : vector<5x64xf32>, vector<64x20xf32>, vector<5x20xf32> -> vector<5x20xf32>
    %219 = vector.broadcast %205 : f32 to vector<5x20xf32>
    %220 = arith.cmpf ole, %218, %219 : vector<5x20xf32>
    %cst_102 = arith.constant 4.000000e-03 : f32
    %cst_103 = arith.constant -3.000000e-03 : f32
    %221 = vector.broadcast %cst_102 : f32 to vector<5x20xf32>
    %222 = vector.broadcast %cst_103 : f32 to vector<5x20xf32>
    %223 = arith.select %220, %221, %222 : vector<5x20xi1>, vector<5x20xf32>
    %224 = arith.index_cast %190 : i32 to index
    %c0_104 = arith.constant 0 : index
    %c0_105 = arith.constant 0 : index
    %225 = vector.load %arg7[%224, %c0_104, %c0_105] : memref<8x5x20xf32, #tpu.memory_space<vmem>>, vector<1x5x20xf32>
    %226 = vector.shape_cast %225 : vector<1x5x20xf32> to vector<5x20xf32>
    %227 = vector.shape_cast %223 : vector<5x20xf32> to vector<1x5x20xf32>
    tpu.vector_store %arg7[%224, %c0_104, %c0_105], %227 {strides = array<i32>} : memref<8x5x20xf32, #tpu.memory_space<vmem>>, vector<1x5x20xf32>,
    %c3 = arith.constant 3 : index
    %228 = memref.load %arg1[%c3] : memref<9xi32, #tpu.memory_space<smem>>
    %c4 = arith.constant 4 : index
    %229 = memref.load %arg1[%c4] : memref<9xi32, #tpu.memory_space<smem>>
    %c5 = arith.constant 5 : index
    %230 = memref.load %arg1[%c5] : memref<9xi32, #tpu.memory_space<smem>>
    %231 = vector.broadcast %228 : i32 to vector<8x144xi32>
    %232 = arith.cmpi eq, %182, %231 : vector<8x144xi32>
    %c12_i32_106 = arith.constant 12 : i32
    %233 = arith.muli %229, %c12_i32_106 : i32
    %234 = arith.addi %233, %230 : i32
    %235 = vector.broadcast %234 : i32 to vector<8x144xi32>
    %236 = arith.cmpi eq, %183, %235 : vector<8x144xi32>
    %237 = arith.andi %232, %236 : vector<8x144xi1>
    %cst_107 = arith.constant 0.000000e+00 : f32
    %238 = vector.broadcast %cst_107 : f32 to vector<8x144xf32>
    %239 = arith.select %237, %181, %238 : vector<8x144xi1>, vector<8x144xf32>
    %240 = vector.shape_cast %239 : vector<8x144xf32> to vector<1x8x144xf32>
    %cst_108 = arith.constant dense<0.000000e+00> : vector<1xf32>
    %241 = vector.multi_reduction <add>, %240, %cst_108 [1, 2] : vector<1x8x144xf32> to vector<1xf32>
    %242 = vector.shape_cast %241 : vector<1xf32> to vector<1x1x1xf32>
    %243 = vector.extract %242[0, 0, 0] : f32 from vector<1x1x1xf32>
    %244 = vector.broadcast %229 : i32 to vector<5x16xi32>
    %245 = arith.addi %184, %244 : vector<5x16xi32>
    %246 = arith.cmpi eq, %185, %245 : vector<5x16xi32>
    %247 = arith.extui %246 : vector<5x16xi1> to vector<5x16xi32>
    %248 = arith.sitofp %247 : vector<5x16xi32> to vector<5x16xf32>
    %249 = vector.broadcast %230 : i32 to vector<1x20xi32>
    %250 = arith.addi %187, %249 : vector<1x20xi32>
    %251 = vector.broadcast %250 : vector<1x20xi32> to vector<64x20xi32>
    %252 = arith.cmpi eq, %186, %251 : vector<64x20xi32>
    %253 = arith.extui %252 : vector<64x20xi1> to vector<64x20xi32>
    %254 = arith.sitofp %253 : vector<64x20xi32> to vector<64x20xf32>
    %cst_109 = arith.constant dense<0.000000e+00> : vector<5x64xf32>
    %255 = tpu.matmul %248, %88, %cst_109 {dimension_numbers = #tpu.dot_dimension_numbers<[1], [0], [0], [1], [0, 0, 1, 1], [], []>} : vector<5x16xf32>, vector<16x64xf32>, vector<5x64xf32> -> vector<5x64xf32>
    %cst_110 = arith.constant dense<0.000000e+00> : vector<5x20xf32>
    %256 = tpu.matmul %255, %254, %cst_110 {dimension_numbers = #tpu.dot_dimension_numbers<[1], [0], [0], [1], [0, 0, 1, 1], [], []>} : vector<5x64xf32>, vector<64x20xf32>, vector<5x20xf32> -> vector<5x20xf32>
    %257 = vector.broadcast %243 : f32 to vector<5x20xf32>
    %258 = arith.cmpf ole, %256, %257 : vector<5x20xf32>
    %cst_111 = arith.constant 4.000000e-03 : f32
    %cst_112 = arith.constant -3.000000e-03 : f32
    %259 = vector.broadcast %cst_111 : f32 to vector<5x20xf32>
    %260 = vector.broadcast %cst_112 : f32 to vector<5x20xf32>
    %261 = arith.select %258, %259, %260 : vector<5x20xi1>, vector<5x20xf32>
    %262 = arith.index_cast %228 : i32 to index
    %c0_113 = arith.constant 0 : index
    %c0_114 = arith.constant 0 : index
    %263 = vector.load %arg7[%262, %c0_113, %c0_114] : memref<8x5x20xf32, #tpu.memory_space<vmem>>, vector<1x5x20xf32>
    %264 = vector.shape_cast %263 : vector<1x5x20xf32> to vector<5x20xf32>
    %265 = vector.shape_cast %261 : vector<5x20xf32> to vector<1x5x20xf32>
    tpu.vector_store %arg7[%262, %c0_113, %c0_114], %265 {strides = array<i32>} : memref<8x5x20xf32, #tpu.memory_space<vmem>>, vector<1x5x20xf32>,
    %c6 = arith.constant 6 : index
    %266 = memref.load %arg1[%c6] : memref<9xi32, #tpu.memory_space<smem>>
    %c7 = arith.constant 7 : index
    %267 = memref.load %arg1[%c7] : memref<9xi32, #tpu.memory_space<smem>>
    %c8 = arith.constant 8 : index
    %268 = memref.load %arg1[%c8] : memref<9xi32, #tpu.memory_space<smem>>
    %269 = vector.broadcast %266 : i32 to vector<8x144xi32>
    %270 = arith.cmpi eq, %182, %269 : vector<8x144xi32>
    %c12_i32_115 = arith.constant 12 : i32
    %271 = arith.muli %267, %c12_i32_115 : i32
    %272 = arith.addi %271, %268 : i32
    %273 = vector.broadcast %272 : i32 to vector<8x144xi32>
    %274 = arith.cmpi eq, %183, %273 : vector<8x144xi32>
    %275 = arith.andi %270, %274 : vector<8x144xi1>
    %cst_116 = arith.constant 0.000000e+00 : f32
    %276 = vector.broadcast %cst_116 : f32 to vector<8x144xf32>
    %277 = arith.select %275, %181, %276 : vector<8x144xi1>, vector<8x144xf32>
    %278 = vector.shape_cast %277 : vector<8x144xf32> to vector<1x8x144xf32>
    %cst_117 = arith.constant dense<0.000000e+00> : vector<1xf32>
    %279 = vector.multi_reduction <add>, %278, %cst_117 [1, 2] : vector<1x8x144xf32> to vector<1xf32>
    %280 = vector.shape_cast %279 : vector<1xf32> to vector<1x1x1xf32>
    %281 = vector.extract %280[0, 0, 0] : f32 from vector<1x1x1xf32>
    %282 = vector.broadcast %267 : i32 to vector<5x16xi32>
    %283 = arith.addi %184, %282 : vector<5x16xi32>
    %284 = arith.cmpi eq, %185, %283 : vector<5x16xi32>
    %285 = arith.extui %284 : vector<5x16xi1> to vector<5x16xi32>
    %286 = arith.sitofp %285 : vector<5x16xi32> to vector<5x16xf32>
    %287 = vector.broadcast %268 : i32 to vector<1x20xi32>
    %288 = arith.addi %187, %287 : vector<1x20xi32>
    %289 = vector.broadcast %288 : vector<1x20xi32> to vector<64x20xi32>
    %290 = arith.cmpi eq, %186, %289 : vector<64x20xi32>
    %291 = arith.extui %290 : vector<64x20xi1> to vector<64x20xi32>
    %292 = arith.sitofp %291 : vector<64x20xi32> to vector<64x20xf32>
    %cst_118 = arith.constant dense<0.000000e+00> : vector<5x64xf32>
    %293 = tpu.matmul %286, %88, %cst_118 {dimension_numbers = #tpu.dot_dimension_numbers<[1], [0], [0], [1], [0, 0, 1, 1], [], []>} : vector<5x16xf32>, vector<16x64xf32>, vector<5x64xf32> -> vector<5x64xf32>
    %cst_119 = arith.constant dense<0.000000e+00> : vector<5x20xf32>
    %294 = tpu.matmul %293, %292, %cst_119 {dimension_numbers = #tpu.dot_dimension_numbers<[1], [0], [0], [1], [0, 0, 1, 1], [], []>} : vector<5x64xf32>, vector<64x20xf32>, vector<5x20xf32> -> vector<5x20xf32>
    %295 = vector.broadcast %281 : f32 to vector<5x20xf32>
    %296 = arith.cmpf ole, %294, %295 : vector<5x20xf32>
    %cst_120 = arith.constant 4.000000e-03 : f32
    %cst_121 = arith.constant -3.000000e-03 : f32
    %297 = vector.broadcast %cst_120 : f32 to vector<5x20xf32>
    %298 = vector.broadcast %cst_121 : f32 to vector<5x20xf32>
    %299 = arith.select %296, %297, %298 : vector<5x20xi1>, vector<5x20xf32>
    %300 = arith.index_cast %266 : i32 to index
    %c0_122 = arith.constant 0 : index
    %c0_123 = arith.constant 0 : index
    %301 = vector.load %arg7[%300, %c0_122, %c0_123] : memref<8x5x20xf32, #tpu.memory_space<vmem>>, vector<1x5x20xf32>
    %302 = vector.shape_cast %301 : vector<1x5x20xf32> to vector<5x20xf32>
    %303 = vector.shape_cast %299 : vector<5x20xf32> to vector<1x5x20xf32>
    tpu.vector_store %arg7[%300, %c0_122, %c0_123], %303 {strides = array<i32>} : memref<8x5x20xf32, #tpu.memory_space<vmem>>, vector<1x5x20xf32>,
    %c0_124 = arith.constant 0 : index
    %c0_125 = arith.constant 0 : index
    %c0_126 = arith.constant 0 : index
    %304 = vector.load %arg4[%c0_124, %c0_125, %c0_126] : memref<8x5x20xf32, #tpu.memory_space<vmem>>, vector<8x5x20xf32>
    %c0_127 = arith.constant 0 : index
    %c0_128 = arith.constant 0 : index
    %c0_129 = arith.constant 0 : index
    %305 = vector.load %arg7[%c0_127, %c0_128, %c0_129] : memref<8x5x20xf32, #tpu.memory_space<vmem>>, vector<8x5x20xf32>
    %cst_130 = arith.constant 0.000000e+00 : f32
    %306 = vector.broadcast %cst_130 : f32 to vector<8x5x20xf32>
    %307 = arith.subf %304, %306 : vector<8x5x20xf32>
    %cst_131 = arith.constant 1.000000e+00 : f32
    %308 = vector.broadcast %cst_131 : f32 to vector<8x5x20xf32>
    %309 = arith.subf %308, %304 : vector<8x5x20xf32>
    %310 = arith.mulf %307, %309 : vector<8x5x20xf32>
    %311 = arith.mulf %305, %310 : vector<8x5x20xf32>
    %312 = arith.addf %304, %311 : vector<8x5x20xf32>
    %cst_132 = arith.constant 0.000000e+00 : f32
    %cst_133 = arith.constant 1.000000e+00 : f32
    %313 = vector.broadcast %cst_132 : f32 to vector<8x5x20xf32>
    %314 = arith.maximumf %313, %312 : vector<8x5x20xf32>
    %315 = vector.broadcast %cst_133 : f32 to vector<8x5x20xf32>
    %316 = arith.minimumf %315, %314 : vector<8x5x20xf32>
    %c0_134 = arith.constant 0 : index
    %c0_135 = arith.constant 0 : index
    %c0_136 = arith.constant 0 : index
    %317 = vector.load %arg6[%c0_134, %c0_135, %c0_136] : memref<8x5x20xf32, #tpu.memory_space<vmem>>, vector<8x5x20xf32>
    tpu.vector_store %arg6[%c0_134, %c0_135, %c0_136], %316 {strides = array<i32>} : memref<8x5x20xf32, #tpu.memory_space<vmem>>, vector<8x5x20xf32>,
    return
  }
  func.func @transform_0(%arg0: i32, %arg1: memref<9xi32, #tpu.memory_space<smem>>) -> (i32, i32, i32) {
    %c0_i32 = arith.constant 0 : i32
    %c0_i32_0 = arith.constant 0 : i32
    %c0_i32_1 = arith.constant 0 : i32
    %c0_i32_2 = arith.constant 0 : i32
    return %c0_i32, %c0_i32_0, %c0_i32_1 : i32, i32, i32
  }
  func.func @transform_1(%arg0: i32, %arg1: memref<9xi32, #tpu.memory_space<smem>>) -> (i32, i32, i32) {
    %c0_i32 = arith.constant 0 : i32
    %c0_i32_0 = arith.constant 0 : i32
    %c0_i32_1 = arith.constant 0 : i32
    %c0_i32_2 = arith.constant 0 : i32
    return %c0_i32, %c0_i32_0, %c0_i32_1 : i32, i32, i32
  }
  func.func @transform_2(%arg0: i32, %arg1: memref<9xi32, #tpu.memory_space<smem>>) -> (i32, i32, i32) {
    %c0_i32 = arith.constant 0 : i32
    %c0_i32_0 = arith.constant 0 : i32
    %c0_i32_1 = arith.constant 0 : i32
    %c0_i32_2 = arith.constant 0 : i32
    return %c0_i32, %c0_i32_0, %c0_i32_1 : i32, i32, i32
  }
  func.func @transform_3(%arg0: i32, %arg1: memref<9xi32, #tpu.memory_space<smem>>) -> (i32, i32) {
    %c0_i32 = arith.constant 0 : i32
    %c0_i32_0 = arith.constant 0 : i32
    %c0_i32_1 = arith.constant 0 : i32
    return %c0_i32, %c0_i32_0 : i32, i32
  }
  func.func @transform_4(%arg0: i32, %arg1: memref<9xi32, #tpu.memory_space<smem>>) -> (i32, i32, i32) {
    %c0_i32 = arith.constant 0 : i32
    %c0_i32_0 = arith.constant 0 : i32
    %c0_i32_1 = arith.constant 0 : i32
    %c0_i32_2 = arith.constant 0 : i32
    return %c0_i32, %c0_i32_0, %c0_i32_1 : i32, i32, i32
  }
}

</mosaic_0001>

<llo_original>
// kernel: tpu_custom_call.1
$region0: #{tpu_custom_call.1}
  #allocation0 [shape = 'u32[]', space=smem, size = 0x4, offset = 0x4, fixed_abs, tag = 'smem constant byte address 0x4 - core index']
  #allocation1 [shape = 'u32[144,128]{1,0:T(1,128)}', space=vmem, size = 0x12000, scoped, tag = 'internal scratch']
  #allocation2 [shape = 'f32[8,5,20]{2,1,0:T(8,128)}', space=vmem, size = 0x8000, scoped, tag = 'scratch operand']
  #allocation3 [shape = 's32[1]{0}', space=sflag, size = 0x4, scoped, tag = 'scoped memory for tpu_custom_call.1']
  #allocation4 [shape = 'u8[512]{0}', space=smem, size = 0x200, scoped, tag = 'prefetched SMEM operand 0']
  %s0 = inlined_call_operand.vmem [shape: s32[9], index: 0, kind: input, shape index: {}]
  %s1 = inlined_call_operand.hbm [shape: f32[8,16,64], index: 1, kind: input, shape index: {}]
  %s2 = inlined_call_operand.hbm [shape: f32[8,8,144], index: 2, kind: input, shape index: {}]
  %s3 = inlined_call_operand.vmem [shape: f32[8,5,20], index: 3, kind: input, shape index: {}]
  %s4 = inlined_call_operand.vmem [shape: s32[1,20], index: 4, kind: input, shape index: {}]
  %s5 = inlined_call_operand.vmem [shape: f32[8,5,20], index: 5, kind: output, shape index: {}]
  %s6 = sld [smem:[#allocation0]]
  $region34: #{tpu_custom_call.1} parent=0
    _
  %s8 = ssub.s32 1, %s6
  %s9 = scalar_select 0, %s8, %s6
  %s10 = sshll.u32 %s0, 4
  %s11 = int_to_ptr.vmem [resolvable:$true] %s10
  %13 = dma.vmem_to_smem %s11, 16, [#allocation4], [#allocation3]
  %14 = dma.done [#allocation3], 16
  %15 = sfence
  $region1: #{tpu_custom_call.1} parent=0
    #allocation5 [shape = 'u8[65536]{0}', space=vmem, size = 0x10000, scoped, tag = 'input window, operand 1, single buffered']
    #allocation6 [shape = 's32[1]{0}', space=sflag, size = 0x4, scoped, tag = 'scoped memory for tpu_custom_call.1']
    #allocation7 [shape = 'u8[65536]{0}', space=vmem, size = 0x10000, scoped, tag = 'input window, operand 2, single buffered']
    #allocation8 [shape = 's32[1]{0}', space=sflag, size = 0x4, scoped, tag = 'scoped memory for tpu_custom_call.1']
    %16 = vsyncpa [#allocation6], 0
    %17 = vsyncpa [#allocation8], 0
    // Predicated region
    $region2: #{tpu_custom_call.1} parent=1 // pred_check
      _
    $region3: #{tpu_custom_call.1} parent=1 // pred_check_branch
      %19 = sbr.rel (0) target = $region5
    $region4: #{tpu_custom_call.1} parent=1 // pred_region
      %s21 = ssub.s32 2048, 2048
      %22 = vsyncadd [#allocation6], %s21
      %s23 = sshll.u32 [#allocation5], 4
      %s24 = int_to_ptr.vmem [resolvable:$true] %s23
      %29 = dma.hbm_to_vmem [thread:$0]  %s1, 2048, %s24, [#allocation6], 128, 128, 8
    $region5: #{tpu_custom_call.1} parent=1 // pred_fallthru
      _
    // Predicated region
    $region6: #{tpu_custom_call.1} parent=1 // pred_check
      _
    $region7: #{tpu_custom_call.1} parent=1 // pred_check_branch
      %31 = sbr.rel (0) target = $region9
    $region8: #{tpu_custom_call.1} parent=1 // pred_region
      %s33 = ssub.s32 2048, 2048
      %34 = vsyncadd [#allocation8], %s33
      %s35 = sshll.u32 [#allocation7], 4
      %s36 = int_to_ptr.vmem [resolvable:$true] %s35
      %41 = dma.hbm_to_vmem [thread:$0]  %s2, 2048, %s36, [#allocation8], 256, 256, 16
    $region9: #{tpu_custom_call.1} parent=1 // pred_fallthru
      _
    // Predicated region
    $region10: #{tpu_custom_call.1} parent=1 // pred_check
      _
    $region11: #{tpu_custom_call.1} parent=1 // pred_check_branch
      %43 = sbr.rel (0) target = $region13
    $region12: #{tpu_custom_call.1} parent=1 // pred_region
      _
    $region13: #{tpu_custom_call.1} parent=1 // pred_fallthru
      _
    // Predicated region
    $region14: #{tpu_custom_call.1} parent=1 // pred_check
      _
    $region15: #{tpu_custom_call.1} parent=1 // pred_check_branch
      %45 = sbr.rel (0) target = $region17
    $region16: #{tpu_custom_call.1} parent=1 // pred_region
      _
    $region17: #{tpu_custom_call.1} parent=1 // pred_fallthru
      _
    // Predicated region
    $region18: #{tpu_custom_call.1} parent=1 // pred_check
      _
    $region19: #{tpu_custom_call.1} parent=1 // pred_check_branch
      %47 = sbr.rel (0) target = $region21
    $region20: #{tpu_custom_call.1} parent=1 // pred_region
      %48 = dma.done [#allocation6], 2048
    $region21: #{tpu_custom_call.1} parent=1 // pred_fallthru
      _
    // Predicated region
    $region22: #{tpu_custom_call.1} parent=1 // pred_check
      _
    $region23: #{tpu_custom_call.1} parent=1 // pred_check_branch
      %50 = sbr.rel (0) target = $region25
    $region24: #{tpu_custom_call.1} parent=1 // pred_region
      %51 = dma.done [#allocation8], 2048
    $region25: #{tpu_custom_call.1} parent=1 // pred_fallthru
      _
    %v52 = vld [vmem:[#allocation5] sm:$0xff]
    %v53 = vld [vmem:[#allocation5 + $0x8] sm:$0xff]
    %vm54 = vcmp.ne.f32.partialorder %v52, 0.0
    %vm55 = vcmp.ne.f32.partialorder %v53, 0.0
    %v56 = vsel %vm54, 1.0, 10000000.0
    %v57 = vsel %vm55, 1.0, 10000000.0
    %v58 = vmin.f32 %v56, 10000000.0
    %v59 = vmin.f32 %v57, 10000000.0
    %s60 = scalar_lea.vmem [#allocation5], 16
    %v61 = vld [vmem:[%s60] sm:$0xff]
    %v62 = vld [vmem:[%s60 + $0x8] sm:$0xff]
    %vm63 = vcmp.ne.f32.partialorder %v61, 0.0
    %vm64 = vcmp.ne.f32.partialorder %v62, 0.0
    %v65 = vsel %vm63, 2.0, 10000000.0
    %v66 = vsel %vm64, 2.0, 10000000.0
    %v67 = vmin.f32 %v58, %v65
    %v68 = vmin.f32 %v59, %v66
    %s69 = scalar_lea.vmem [#allocation5], 32
    %v70 = vld [vmem:[%s69] sm:$0xff]
    %v71 = vld [vmem:[%s69 + $0x8] sm:$0xff]
    %vm72 = vcmp.ne.f32.partialorder %v70, 0.0
    %vm73 = vcmp.ne.f32.partialorder %v71, 0.0
    %v74 = vsel %vm72, 3.0, 10000000.0
    %v75 = vsel %vm73, 3.0, 10000000.0
    %v76 = vmin.f32 %v67, %v74
    %v77 = vmin.f32 %v68, %v75
    %s78 = scalar_lea.vmem [#allocation5], 48
    %v79 = vld [vmem:[%s78] sm:$0xff]
    %v80 = vld [vmem:[%s78 + $0x8] sm:$0xff]
    %vm81 = vcmp.ne.f32.partialorder %v79, 0.0
    %vm82 = vcmp.ne.f32.partialorder %v80, 0.0
    %v83 = vsel %vm81, 4.0, 10000000.0
    %v84 = vsel %vm82, 4.0, 10000000.0
    %v85 = vmin.f32 %v76, %v83
    %v86 = vmin.f32 %v77, %v84
    %s87 = scalar_lea.vmem [#allocation5], 64
    %v88 = vld [vmem:[%s87] sm:$0xff]
    %v89 = vld [vmem:[%s87 + $0x8] sm:$0xff]
    %vm90 = vcmp.ne.f32.partialorder %v88, 0.0
    %vm91 = vcmp.ne.f32.partialorder %v89, 0.0
    %v92 = vsel %vm90, 5.0, 10000000.0
    %v93 = vsel %vm91, 5.0, 10000000.0
    %v94 = vmin.f32 %v85, %v92
    %v95 = vmin.f32 %v86, %v93
    %s96 = scalar_lea.vmem [#allocation5], 80
    %v97 = vld [vmem:[%s96] sm:$0xff]
    %v98 = vld [vmem:[%s96 + $0x8] sm:$0xff]
    %vm99 = vcmp.ne.f32.partialorder %v97, 0.0
    %vm100 = vcmp.ne.f32.partialorder %v98, 0.0
    %v101 = vsel %vm99, 6.0, 10000000.0
    %v102 = vsel %vm100, 6.0, 10000000.0
    %v103 = vmin.f32 %v94, %v101
    %v104 = vmin.f32 %v95, %v102
    %s105 = scalar_lea.vmem [#allocation5], 96
    %v106 = vld [vmem:[%s105] sm:$0xff]
    %v107 = vld [vmem:[%s105 + $0x8] sm:$0xff]
    %vm108 = vcmp.ne.f32.partialorder %v106, 0.0
    %vm109 = vcmp.ne.f32.partialorder %v107, 0.0
    %v110 = vsel %vm108, 7.0, 10000000.0
    %v111 = vsel %vm109, 7.0, 10000000.0
    %v112 = vmin.f32 %v103, %v110
    %v113 = vmin.f32 %v104, %v111
    %s114 = scalar_lea.vmem [#allocation5], 112
    %v115 = vld [vmem:[%s114] sm:$0xff]
    %v116 = vld [vmem:[%s114 + $0x8] sm:$0xff]
    %vm117 = vcmp.ne.f32.partialorder %v115, 0.0
    %vm118 = vcmp.ne.f32.partialorder %v116, 0.0
    %v119 = vsel %vm117, 8.0, 10000000.0
    %v120 = vsel %vm118, 8.0, 10000000.0
    %v121 = vmin.f32 %v112, %v119
    %v122 = vmin.f32 %v113, %v120
    %v123 = vld [vmem:[#allocation7] sm:$0xff]
    %v124 = vld [vmem:[#allocation7 + $0x8] sm:$0xff]
    %vm125 = vcmp.ne.f32.partialorder %v123, 0.0
    %vm126 = vcmp.ne.f32.partialorder %v124, 0.0
    %v127 = vsel %vm125, 1.0, 10000000.0
    %v128 = vsel %vm126, 1.0, 10000000.0
    %v129 = vmin.f32 %v127, 10000000.0
    %v130 = vmin.f32 %v128, 10000000.0
    %s131 = scalar_lea.vmem [#allocation7], 16
    %v132 = vld [vmem:[%s131] sm:$0xff]
    %v133 = vld [vmem:[%s131 + $0x8] sm:$0xff]
    %vm134 = vcmp.ne.f32.partialorder %v132, 0.0
    %vm135 = vcmp.ne.f32.partialorder %v133, 0.0
    %v136 = vsel %vm134, 2.0, 10000000.0
    %v137 = vsel %vm135, 2.0, 10000000.0
    %v138 = vmin.f32 %v129, %v136
    %v139 = vmin.f32 %v130, %v137
    %s140 = scalar_lea.vmem [#allocation7], 32
    %v141 = vld [vmem:[%s140] sm:$0xff]
    %v142 = vld [vmem:[%s140 + $0x8] sm:$0xff]
    %vm143 = vcmp.ne.f32.partialorder %v141, 0.0
    %vm144 = vcmp.ne.f32.partialorder %v142, 0.0
    %v145 = vsel %vm143, 3.0, 10000000.0
    %v146 = vsel %vm144, 3.0, 10000000.0
    %v147 = vmin.f32 %v138, %v145
    %v148 = vmin.f32 %v139, %v146
    %s149 = scalar_lea.vmem [#allocation7], 48
    %v150 = vld [vmem:[%s149] sm:$0xff]
    %v151 = vld [vmem:[%s149 + $0x8] sm:$0xff]
    %vm152 = vcmp.ne.f32.partialorder %v150, 0.0
    %vm153 = vcmp.ne.f32.partialorder %v151, 0.0
    %v154 = vsel %vm152, 4.0, 10000000.0
    %v155 = vsel %vm153, 4.0, 10000000.0
    %v156 = vmin.f32 %v147, %v154
    %v157 = vmin.f32 %v148, %v155
    %s158 = scalar_lea.vmem [#allocation7], 64
    %v159 = vld [vmem:[%s158] sm:$0xff]
    %v160 = vld [vmem:[%s158 + $0x8] sm:$0xff]
    %vm161 = vcmp.ne.f32.partialorder %v159, 0.0
    %vm162 = vcmp.ne.f32.partialorder %v160, 0.0
    %v163 = vsel %vm161, 5.0, 10000000.0
    %v164 = vsel %vm162, 5.0, 10000000.0
    %v165 = vmin.f32 %v156, %v163
    %v166 = vmin.f32 %v157, %v164
    %s167 = scalar_lea.vmem [#allocation7], 80
    %v168 = vld [vmem:[%s167] sm:$0xff]
    %v169 = vld [vmem:[%s167 + $0x8] sm:$0xff]
    %vm170 = vcmp.ne.f32.partialorder %v168, 0.0
    %vm171 = vcmp.ne.f32.partialorder %v169, 0.0
    %v172 = vsel %vm170, 6.0, 10000000.0
    %v173 = vsel %vm171, 6.0, 10000000.0
    %v174 = vmin.f32 %v165, %v172
    %v175 = vmin.f32 %v166, %v173
    %s176 = scalar_lea.vmem [#allocation7], 96
    %v177 = vld [vmem:[%s176] sm:$0xff]
    %v178 = vld [vmem:[%s176 + $0x8] sm:$0xff]
    %vm179 = vcmp.ne.f32.partialorder %v177, 0.0
    %vm180 = vcmp.ne.f32.partialorder %v178, 0.0
    %v181 = vsel %vm179, 7.0, 10000000.0
    %v182 = vsel %vm180, 7.0, 10000000.0
    %v183 = vmin.f32 %v174, %v181
    %v184 = vmin.f32 %v175, %v182
    %s185 = scalar_lea.vmem [#allocation7], 112
    %v186 = vld [vmem:[%s185] sm:$0xff]
    %v187 = vld [vmem:[%s185 + $0x8] sm:$0xff]
    %vm188 = vcmp.ne.f32.partialorder %v186, 0.0
    %vm189 = vcmp.ne.f32.partialorder %v187, 0.0
    %v190 = vsel %vm188, 8.0, 10000000.0
    %v191 = vsel %vm189, 8.0, 10000000.0
    %v192 = vmin.f32 %v183, %v190
    %v193 = vmin.f32 %v184, %v191
    %vm194 = vcmp.lt.f32.partialorder %v192, 5000000.0
    %vm195 = vcmp.lt.f32.partialorder %v193, 5000000.0
    %v196 = vsel %vm194, %v192, 0.0
    %v197 = vsel %vm195, %v193, 0.0
    %v198 = vlaneseq
    %v199 = vshrl.u32 %v198, 7
    %v200 = vlaneseq
    %v201 = vand.u32 %v200, 127
    %v202 = vadd.s32 %v201, 128
    %v203 = vadd.s32 %v199, 8
    %v204 = vadd.s32 %v199, 16
    %v205 = vadd.s32 %v199, 24
    %v206 = vadd.s32 %v199, 32
    %v207 = vadd.s32 %v199, 40
    %v208 = vadd.s32 %v199, 48
    %v209 = vadd.s32 %v199, 56
    %v210 = vld [vmem:[%s4] sm:$0x1]
    %vm211 = vcmask 159744
    %212 = vst.msk [vmem:[#allocation2] sm:$0x1f] %vm211, 0.0
    %213 = vst.msk [vmem:[#allocation2 + $0x8] sm:$0x1f] %vm211, 0.0
    %214 = vst.msk [vmem:[#allocation2 + $0x10] sm:$0x1f] %vm211, 0.0
    %215 = vst.msk [vmem:[#allocation2 + $0x18] sm:$0x1f] %vm211, 0.0
    %216 = vst.msk [vmem:[#allocation2 + $0x20] sm:$0x1f] %vm211, 0.0
    %217 = vst.msk [vmem:[#allocation2 + $0x28] sm:$0x1f] %vm211, 0.0
    %218 = vst.msk [vmem:[#allocation2 + $0x30] sm:$0x1f] %vm211, 0.0
    %219 = vst.msk [vmem:[#allocation2 + $0x38] sm:$0x1f] %vm211, 0.0
    %s220 = sld [smem:[#allocation4]]
    %s221 = sld [smem:[#allocation4 + $0x1]]
    %s222 = sld [smem:[#allocation4 + $0x2]]
    %v223 = vstv %s220
    %vm224 = vcmp.eq.s32.totalorder %v199, %v223
    %s225 = smul.u32 %s221, 12
    %s226 = sadd.s32 %s225, %s222
    %v227 = vstv %s226
    %vm228 = vcmp.eq.s32.totalorder %v201, %v227
    %vm229 = vcmp.eq.s32.totalorder %v202, %v227
    %vm230 = vmand %vm224, %vm228
    %vm231 = vmand %vm224, %vm229
    %v232 = vsel %vm230, %v196, 0.0
    %v233 = vsel %vm231, %v197, 0.0
    %vm234 = vcmask 130048
    %v235 = vsel %vm234, %v233, 0.0
    %v236 = vadd.f32 %v232, %v235
    %237 = vadd.xlane.f32.xlu0 %v236
    %v238 = vpop.xlane.xlu0 %237
    %v239 = vrot.slane %v238, 4
    %v240 = vadd.f32 %v238, %v239
    %v241 = vrot.slane %v240, 2
    %v242 = vadd.f32 %v240, %v241
    %v243 = vrot.slane %v242, 1
    %v244 = vadd.f32 %v242, %v243
    %s245 = vtos %v244
    %v246 = vstv %s221
    %v247 = vadd.s32 %v199, %v246
    %vm248 = vcmp.eq.s32.totalorder %v201, %v247
    %v249 = vsel %vm248, 1, 0
    %v250 = vcvt.s32.f32 %v249
    %v251 = vstv %s222
    %v252 = vadd.s32 %v210, %v251
    %v253 = vlaneseq
    %v254 = vshrl.u32 %v253, 7
    %v255 = vsub.s32 0, %v254
    %v256 = vrot.slane %v252, %v255
    %vm257 = vcmp.eq.s32.totalorder %v199, %v256
    %vm258 = vcmp.eq.s32.totalorder %v203, %v256
    %vm259 = vcmp.eq.s32.totalorder %v204, %v256
    %vm260 = vcmp.eq.s32.totalorder %v205, %v256
    %vm261 = vcmp.eq.s32.totalorder %v206, %v256
    %vm262 = vcmp.eq.s32.totalorder %v207, %v256
    %vm263 = vcmp.eq.s32.totalorder %v208, %v256
    %vm264 = vcmp.eq.s32.totalorder %v209, %v256
    %v265 = vsel %vm257, 1, 0
    %v266 = vsel %vm258, 1, 0
    %v267 = vsel %vm259, 1, 0
    %v268 = vsel %vm260, 1, 0
    %v269 = vsel %vm261, 1, 0
    %v270 = vsel %vm262, 1, 0
    %v271 = vsel %vm263, 1, 0
    %v272 = vsel %vm264, 1, 0
    %v273 = vcvt.s32.f32 %v265
    %v274 = vcvt.s32.f32 %v266
    %v275 = vcvt.s32.f32 %v267
    %v276 = vcvt.s32.f32 %v268
    %v277 = vcvt.s32.f32 %v269
    %v278 = vcvt.s32.f32 %v270
    %v279 = vcvt.s32.f32 %v271
    %v280 = vcvt.s32.f32 %v272
    %v282 = vsel %vm234, %v250, 0
    %284 = vmatprep.subr.mxu0 0.0
    %285 = vmatpush1.msra.mxu0 %v121
    %286 = vmatprep.subr.mxu0 0.0
    %287 = vmatpush1.msra.mxu0 %v122
    %288 = vmatprep.subr.mxu0 0.0
    %289 = vmatpush1.msra.mxu0 0.0
    %290 = vmatprep.subr.mxu0 0.0
    %291 = vmatpush1.msra.mxu0 0.0
    %292 = vmatprep.subr.mxu0 0.0
    %293 = vmatpush1.msra.mxu0 0.0
    %294 = vmatprep.subr.mxu0 0.0
    %295 = vmatpush1.msra.mxu0 0.0
    %296 = vmatprep.subr.mxu0 0.0
    %297 = vmatpush1.msra.mxu0 0.0
    %298 = vmatprep.subr.mxu0 0.0
    %299 = vmatpush1.msra.mxu0 0.0
    %300 = vmatprep.subr.mxu0 0.0
    %301 = vmatpush1.msra.mxu0 0.0
    %302 = vmatprep.subr.mxu0 0.0
    %303 = vmatpush1.msra.mxu0 0.0
    %304 = vmatprep.subr.mxu0 0.0
    %305 = vmatpush1.msra.mxu0 0.0
    %306 = vmatprep.subr.mxu0 0.0
    %307 = vmatpush1.msra.mxu0 0.0
    %308 = vmatprep.subr.mxu0 0.0
    %309 = vmatpush1.msra.mxu0 0.0
    %310 = vmatprep.subr.mxu0 0.0
    %311 = vmatpush1.msra.mxu0 0.0
    %312 = vmatprep.subr.mxu0 0.0
    %313 = vmatpush1.msra.mxu0 0.0
    %314 = vmatprep.subr.mxu0 0.0
    %315 = vmatpush1.msra.mxu0 0.0
    %316 = vmatprep.subr.mxu0 0.0
    %317 = vmatpush1.msra.mxu0 0.0
    %318 = vmatprep.subr.mxu0 0.0
    %319 = vmatpush1.msra.mxu0 0.0
    %320 = vmatprep.subr.mxu0 0.0
    %321 = vmatpush1.msra.mxu0 0.0
    %322 = vmatprep.subr.mxu0 0.0
    %323 = vmatpush1.msra.mxu0 0.0
    %324 = vmatprep.subr.mxu0 0.0
    %325 = vmatpush1.msra.mxu0 0.0
    %326 = vmatprep.subr.mxu0 0.0
    %327 = vmatpush1.msra.mxu0 0.0
    %328 = vmatprep.subr.mxu0 0.0
    %329 = vmatpush1.msra.mxu0 0.0
    %330 = vmatprep.subr.mxu0 0.0
    %331 = vmatpush1.msra.mxu0 0.0
    %332 = vmatprep.subr.mxu0 0.0
    %333 = vmatpush1.msra.mxu0 0.0
    %334 = vmatprep.subr.mxu0 0.0
    %335 = vmatpush1.msra.mxu0 0.0
    %336 = vmatprep.subr.mxu0 0.0
    %337 = vmatpush1.msra.mxu0 0.0
    %338 = vmatprep.subr.mxu0 0.0
    %339 = vmatpush1.msra.mxu0 0.0
    %340 = vmatprep.subr.mxu0 0.0
    %341 = vmatpush1.msra.mxu0 0.0
    %342 = vmatprep.subr.mxu0 0.0
    %343 = vmatpush1.msra.mxu0 0.0
    %344 = vmatprep.subr.mxu0 0.0
    %345 = vmatpush1.msra.mxu0 0.0
    %346 = vmatprep.subr.mxu0 0.0
    %347 = vmatpush1.msra.mxu0 0.0
    %348 = vmatprep.mubr.f32.mxu0 0.0
    %349 = vmatmul.mubr.f32.gmra.mrb[0].mxu0 %v282
    %v350 = vpop.f32.mrb[0].mxu0
    %v351 = vadd.f32 0.0, %v350
    %v352 = vpop.f32.mrb[0].mxu0
    %353 = vdwg.mxu0
    %vm354 = vcmask 523264
    %v356 = vsel %vm354, %v351, 0
    %358 = vmatprep.subr.mxu0 0.0
    %359 = vmatpush1.msra.mxu0 %v273
    %360 = vmatprep.subr.mxu0 0.0
    %361 = vmatpush1.msra.mxu0 %v274
    %362 = vmatprep.subr.mxu0 0.0
    %363 = vmatpush1.msra.mxu0 %v275
    %364 = vmatprep.subr.mxu0 0.0
    %365 = vmatpush1.msra.mxu0 %v276
    %366 = vmatprep.subr.mxu0 0.0
    %367 = vmatpush1.msra.mxu0 %v277
    %368 = vmatprep.subr.mxu0 0.0
    %369 = vmatpush1.msra.mxu0 %v278
    %370 = vmatprep.subr.mxu0 0.0
    %371 = vmatpush1.msra.mxu0 %v279
    %372 = vmatprep.subr.mxu0 0.0
    %373 = vmatpush1.msra.mxu0 %v280
    %374 = vmatprep.subr.mxu0 0.0
    %375 = vmatpush1.msra.mxu0 0.0
    %376 = vmatprep.subr.mxu0 0.0
    %377 = vmatpush1.msra.mxu0 0.0
    %378 = vmatprep.subr.mxu0 0.0
    %379 = vmatpush1.msra.mxu0 0.0
    %380 = vmatprep.subr.mxu0 0.0
    %381 = vmatpush1.msra.mxu0 0.0
    %382 = vmatprep.subr.mxu0 0.0
    %383 = vmatpush1.msra.mxu0 0.0
    %384 = vmatprep.subr.mxu0 0.0
    %385 = vmatpush1.msra.mxu0 0.0
    %386 = vmatprep.subr.mxu0 0.0
    %387 = vmatpush1.msra.mxu0 0.0
    %388 = vmatprep.subr.mxu0 0.0
    %389 = vmatpush1.msra.mxu0 0.0
    %390 = vmatprep.subr.mxu0 0.0
    %391 = vmatpush1.msra.mxu0 0.0
    %392 = vmatprep.subr.mxu0 0.0
    %393 = vmatpush1.msra.mxu0 0.0
    %394 = vmatprep.subr.mxu0 0.0
    %395 = vmatpush1.msra.mxu0 0.0
    %396 = vmatprep.subr.mxu0 0.0
    %397 = vmatpush1.msra.mxu0 0.0
    %398 = vmatprep.subr.mxu0 0.0
    %399 = vmatpush1.msra.mxu0 0.0
    %400 = vmatprep.subr.mxu0 0.0
    %401 = vmatpush1.msra.mxu0 0.0
    %402 = vmatprep.subr.mxu0 0.0
    %403 = vmatpush1.msra.mxu0 0.0
    %404 = vmatprep.subr.mxu0 0.0
    %405 = vmatpush1.msra.mxu0 0.0
    %406 = vmatprep.subr.mxu0 0.0
    %407 = vmatpush1.msra.mxu0 0.0
    %408 = vmatprep.subr.mxu0 0.0
    %409 = vmatpush1.msra.mxu0 0.0
    %410 = vmatprep.subr.mxu0 0.0
    %411 = vmatpush1.msra.mxu0 0.0
    %412 = vmatprep.subr.mxu0 0.0
    %413 = vmatpush1.msra.mxu0 0.0
    %414 = vmatprep.subr.mxu0 0.0
    %415 = vmatpush1.msra.mxu0 0.0
    %416 = vmatprep.subr.mxu0 0.0
    %417 = vmatpush1.msra.mxu0 0.0
    %418 = vmatprep.subr.mxu0 0.0
    %419 = vmatpush1.msra.mxu0 0.0
    %420 = vmatprep.subr.mxu0 0.0
    %421 = vmatpush1.msra.mxu0 0.0
    %422 = vmatprep.mubr.f32.mxu0 0.0
    %423 = vmatmul.mubr.f32.gmra.mrb[0].mxu0 %v356
    %v424 = vpop.f32.mrb[0].mxu0
    %v425 = vadd.f32 0.0, %v424
    %v426 = vpop.f32.mrb[0].mxu0
    %427 = vdwg.mxu0
    %v428 = vstv %s245
    %vm429 = vcmp.le.f32.partialorder %v425, %v428
    %v430 = vsel %vm429, 0.004, -0.003
    %s431 = smul.u32 %s220, 8
    %s432 = scalar_lea.vmem [#allocation2], %s431
    %433 = vst.msk [vmem:[%s432] sm:$0x1f] %vm211, %v430
    %s434 = sld [smem:[#allocation4 + $0x3]]
    %s435 = sld [smem:[#allocation4 + $0x4]]
    %s436 = sld [smem:[#allocation4 + $0x5]]
    %v437 = vstv %s434
    %vm438 = vcmp.eq.s32.totalorder %v199, %v437
    %s439 = smul.u32 %s435, 12
    %s440 = sadd.s32 %s439, %s436
    %v441 = vstv %s440
    %vm442 = vcmp.eq.s32.totalorder %v201, %v441
    %vm443 = vcmp.eq.s32.totalorder %v202, %v441
    %vm444 = vmand %vm438, %vm442
    %vm445 = vmand %vm438, %vm443
    %v446 = vsel %vm444, %v196, 0.0
    %v447 = vsel %vm445, %v197, 0.0
    %v448 = vsel %vm234, %v447, 0.0
    %v449 = vadd.f32 %v446, %v448
    %450 = vadd.xlane.f32.xlu0 %v449
    %v451 = vpop.xlane.xlu0 %450
    %v452 = vrot.slane %v451, 4
    %v453 = vadd.f32 %v451, %v452
    %v454 = vrot.slane %v453, 2
    %v455 = vadd.f32 %v453, %v454
    %v456 = vrot.slane %v455, 1
    %v457 = vadd.f32 %v455, %v456
    %s458 = vtos %v457
    %v459 = vstv %s435
    %v460 = vadd.s32 %v199, %v459
    %vm461 = vcmp.eq.s32.totalorder %v201, %v460
    %v462 = vsel %vm461, 1, 0
    %v463 = vcvt.s32.f32 %v462
    %v464 = vstv %s436
    %v465 = vadd.s32 %v210, %v464
    %v466 = vlaneseq
    %v467 = vshrl.u32 %v466, 7
    %v468 = vsub.s32 0, %v467
    %v469 = vrot.slane %v465, %v468
    %vm470 = vcmp.eq.s32.totalorder %v199, %v469
    %vm471 = vcmp.eq.s32.totalorder %v203, %v469
    %vm472 = vcmp.eq.s32.totalorder %v204, %v469
    %vm473 = vcmp.eq.s32.totalorder %v205, %v469
    %vm474 = vcmp.eq.s32.totalorder %v206, %v469
    %vm475 = vcmp.eq.s32.totalorder %v207, %v469
    %vm476 = vcmp.eq.s32.totalorder %v208, %v469
    %vm477 = vcmp.eq.s32.totalorder %v209, %v469
    %v478 = vsel %vm470, 1, 0
    %v479 = vsel %vm471, 1, 0
    %v480 = vsel %vm472, 1, 0
    %v481 = vsel %vm473, 1, 0
    %v482 = vsel %vm474, 1, 0
    %v483 = vsel %vm475, 1, 0
    %v484 = vsel %vm476, 1, 0
    %v485 = vsel %vm477, 1, 0
    %v486 = vcvt.s32.f32 %v478
    %v487 = vcvt.s32.f32 %v479
    %v488 = vcvt.s32.f32 %v480
    %v489 = vcvt.s32.f32 %v481
    %v490 = vcvt.s32.f32 %v482
    %v491 = vcvt.s32.f32 %v483
    %v492 = vcvt.s32.f32 %v484
    %v493 = vcvt.s32.f32 %v485
    %v495 = vsel %vm234, %v463, 0
    %497 = vmatprep.subr.mxu0 0.0
    %498 = vmatpush1.msra.mxu0 %v121
    %499 = vmatprep.subr.mxu0 0.0
    %500 = vmatpush1.msra.mxu0 %v122
    %501 = vmatprep.subr.mxu0 0.0
    %502 = vmatpush1.msra.mxu0 0.0
    %503 = vmatprep.subr.mxu0 0.0
    %504 = vmatpush1.msra.mxu0 0.0
    %505 = vmatprep.subr.mxu0 0.0
    %506 = vmatpush1.msra.mxu0 0.0
    %507 = vmatprep.subr.mxu0 0.0
    %508 = vmatpush1.msra.mxu0 0.0
    %509 = vmatprep.subr.mxu0 0.0
    %510 = vmatpush1.msra.mxu0 0.0
    %511 = vmatprep.subr.mxu0 0.0
    %512 = vmatpush1.msra.mxu0 0.0
    %513 = vmatprep.subr.mxu0 0.0
    %514 = vmatpush1.msra.mxu0 0.0
    %515 = vmatprep.subr.mxu0 0.0
    %516 = vmatpush1.msra.mxu0 0.0
    %517 = vmatprep.subr.mxu0 0.0
    %518 = vmatpush1.msra.mxu0 0.0
    %519 = vmatprep.subr.mxu0 0.0
    %520 = vmatpush1.msra.mxu0 0.0
    %521 = vmatprep.subr.mxu0 0.0
    %522 = vmatpush1.msra.mxu0 0.0
    %523 = vmatprep.subr.mxu0 0.0
    %524 = vmatpush1.msra.mxu0 0.0
    %525 = vmatprep.subr.mxu0 0.0
    %526 = vmatpush1.msra.mxu0 0.0
    %527 = vmatprep.subr.mxu0 0.0
    %528 = vmatpush1.msra.mxu0 0.0
    %529 = vmatprep.subr.mxu0 0.0
    %530 = vmatpush1.msra.mxu0 0.0
    %531 = vmatprep.subr.mxu0 0.0
    %532 = vmatpush1.msra.mxu0 0.0
    %533 = vmatprep.subr.mxu0 0.0
    %534 = vmatpush1.msra.mxu0 0.0
    %535 = vmatprep.subr.mxu0 0.0
    %536 = vmatpush1.msra.mxu0 0.0
    %537 = vmatprep.subr.mxu0 0.0
    %538 = vmatpush1.msra.mxu0 0.0
    %539 = vmatprep.subr.mxu0 0.0
    %540 = vmatpush1.msra.mxu0 0.0
    %541 = vmatprep.subr.mxu0 0.0
    %542 = vmatpush1.msra.mxu0 0.0
    %543 = vmatprep.subr.mxu0 0.0
    %544 = vmatpush1.msra.mxu0 0.0
    %545 = vmatprep.subr.mxu0 0.0
    %546 = vmatpush1.msra.mxu0 0.0
    %547 = vmatprep.subr.mxu0 0.0
    %548 = vmatpush1.msra.mxu0 0.0
    %549 = vmatprep.subr.mxu0 0.0
    %550 = vmatpush1.msra.mxu0 0.0
    %551 = vmatprep.subr.mxu0 0.0
    %552 = vmatpush1.msra.mxu0 0.0
    %553 = vmatprep.subr.mxu0 0.0
    %554 = vmatpush1.msra.mxu0 0.0
    %555 = vmatprep.subr.mxu0 0.0
    %556 = vmatpush1.msra.mxu0 0.0
    %557 = vmatprep.subr.mxu0 0.0
    %558 = vmatpush1.msra.mxu0 0.0
    %559 = vmatprep.subr.mxu0 0.0
    %560 = vmatpush1.msra.mxu0 0.0
    %561 = vmatprep.mubr.f32.mxu0 0.0
    %562 = vmatmul.mubr.f32.gmra.mrb[0].mxu0 %v495
    %v563 = vpop.f32.mrb[0].mxu0
    %v564 = vadd.f32 0.0, %v563
    %v565 = vpop.f32.mrb[0].mxu0
    %566 = vdwg.mxu0
    %v568 = vsel %vm354, %v564, 0
    %570 = vmatprep.subr.mxu0 0.0
    %571 = vmatpush1.msra.mxu0 %v486
    %572 = vmatprep.subr.mxu0 0.0
    %573 = vmatpush1.msra.mxu0 %v487
    %574 = vmatprep.subr.mxu0 0.0
    %575 = vmatpush1.msra.mxu0 %v488
    %576 = vmatprep.subr.mxu0 0.0
    %577 = vmatpush1.msra.mxu0 %v489
    %578 = vmatprep.subr.mxu0 0.0
    %579 = vmatpush1.msra.mxu0 %v490
    %580 = vmatprep.subr.mxu0 0.0
    %581 = vmatpush1.msra.mxu0 %v491
    %582 = vmatprep.subr.mxu0 0.0
    %583 = vmatpush1.msra.mxu0 %v492
    %584 = vmatprep.subr.mxu0 0.0
    %585 = vmatpush1.msra.mxu0 %v493
    %586 = vmatprep.subr.mxu0 0.0
    %587 = vmatpush1.msra.mxu0 0.0
    %588 = vmatprep.subr.mxu0 0.0
    %589 = vmatpush1.msra.mxu0 0.0
    %590 = vmatprep.subr.mxu0 0.0
    %591 = vmatpush1.msra.mxu0 0.0
    %592 = vmatprep.subr.mxu0 0.0
    %593 = vmatpush1.msra.mxu0 0.0
    %594 = vmatprep.subr.mxu0 0.0
    %595 = vmatpush1.msra.mxu0 0.0
    %596 = vmatprep.subr.mxu0 0.0
    %597 = vmatpush1.msra.mxu0 0.0
    %598 = vmatprep.subr.mxu0 0.0
    %599 = vmatpush1.msra.mxu0 0.0
    %600 = vmatprep.subr.mxu0 0.0
    %601 = vmatpush1.msra.mxu0 0.0
    %602 = vmatprep.subr.mxu0 0.0
    %603 = vmatpush1.msra.mxu0 0.0
    %604 = vmatprep.subr.mxu0 0.0
    %605 = vmatpush1.msra.mxu0 0.0
    %606 = vmatprep.subr.mxu0 0.0
    %607 = vmatpush1.msra.mxu0 0.0
    %608 = vmatprep.subr.mxu0 0.0
    %609 = vmatpush1.msra.mxu0 0.0
    %610 = vmatprep.subr.mxu0 0.0
    %611 = vmatpush1.msra.mxu0 0.0
    %612 = vmatprep.subr.mxu0 0.0
    %613 = vmatpush1.msra.mxu0 0.0
    %614 = vmatprep.subr.mxu0 0.0
    %615 = vmatpush1.msra.mxu0 0.0
    %616 = vmatprep.subr.mxu0 0.0
    %617 = vmatpush1.msra.mxu0 0.0
    %618 = vmatprep.subr.mxu0 0.0
    %619 = vmatpush1.msra.mxu0 0.0
    %620 = vmatprep.subr.mxu0 0.0
    %621 = vmatpush1.msra.mxu0 0.0
    %622 = vmatprep.subr.mxu0 0.0
    %623 = vmatpush1.msra.mxu0 0.0
    %624 = vmatprep.subr.mxu0 0.0
    %625 = vmatpush1.msra.mxu0 0.0
    %626 = vmatprep.subr.mxu0 0.0
    %627 = vmatpush1.msra.mxu0 0.0
    %628 = vmatprep.subr.mxu0 0.0
    %629 = vmatpush1.msra.mxu0 0.0
    %630 = vmatprep.subr.mxu0 0.0
    %631 = vmatpush1.msra.mxu0 0.0
    %632 = vmatprep.subr.mxu0 0.0
    %633 = vmatpush1.msra.mxu0 0.0
    %634 = vmatprep.mubr.f32.mxu0 0.0
    %635 = vmatmul.mubr.f32.gmra.mrb[0].mxu0 %v568
    %v636 = vpop.f32.mrb[0].mxu0
    %v637 = vadd.f32 0.0, %v636
    %v638 = vpop.f32.mrb[0].mxu0
    %639 = vdwg.mxu0
    %v640 = vstv %s458
    %vm641 = vcmp.le.f32.partialorder %v637, %v640
    %v642 = vsel %vm641, 0.004, -0.003
    %s643 = smul.u32 %s434, 8
    %s644 = scalar_lea.vmem [#allocation2], %s643
    %645 = vst.msk [vmem:[%s644] sm:$0x1f] %vm211, %v642
    %s646 = sld [smem:[#allocation4 + $0x6]]
    %s647 = sld [smem:[#allocation4 + $0x7]]
    %s648 = sld [smem:[#allocation4 + $0x8]]
    %v649 = vstv %s646
    %vm650 = vcmp.eq.s32.totalorder %v199, %v649
    %s651 = smul.u32 %s647, 12
    %s652 = sadd.s32 %s651, %s648
    %v653 = vstv %s652
    %vm654 = vcmp.eq.s32.totalorder %v201, %v653
    %vm655 = vcmp.eq.s32.totalorder %v202, %v653
    %vm656 = vmand %vm650, %vm654
    %vm657 = vmand %vm650, %vm655
    %v658 = vsel %vm656, %v196, 0.0
    %v659 = vsel %vm657, %v197, 0.0
    %v660 = vsel %vm234, %v659, 0.0
    %v661 = vadd.f32 %v658, %v660
    %662 = vadd.xlane.f32.xlu0 %v661
    %v663 = vpop.xlane.xlu0 %662
    %v664 = vrot.slane %v663, 4
    %v665 = vadd.f32 %v663, %v664
    %v666 = vrot.slane %v665, 2
    %v667 = vadd.f32 %v665, %v666
    %v668 = vrot.slane %v667, 1
    %v669 = vadd.f32 %v667, %v668
    %s670 = vtos %v669
    %v671 = vstv %s647
    %v672 = vadd.s32 %v199, %v671
    %vm673 = vcmp.eq.s32.totalorder %v201, %v672
    %v674 = vsel %vm673, 1, 0
    %v675 = vcvt.s32.f32 %v674
    %v676 = vstv %s648
    %v677 = vadd.s32 %v210, %v676
    %v678 = vlaneseq
    %v679 = vshrl.u32 %v678, 7
    %v680 = vsub.s32 0, %v679
    %v681 = vrot.slane %v677, %v680
    %vm682 = vcmp.eq.s32.totalorder %v199, %v681
    %vm683 = vcmp.eq.s32.totalorder %v203, %v681
    %vm684 = vcmp.eq.s32.totalorder %v204, %v681
    %vm685 = vcmp.eq.s32.totalorder %v205, %v681
    %vm686 = vcmp.eq.s32.totalorder %v206, %v681
    %vm687 = vcmp.eq.s32.totalorder %v207, %v681
    %vm688 = vcmp.eq.s32.totalorder %v208, %v681
    %vm689 = vcmp.eq.s32.totalorder %v209, %v681
    %v690 = vsel %vm682, 1, 0
    %v691 = vsel %vm683, 1, 0
    %v692 = vsel %vm684, 1, 0
    %v693 = vsel %vm685, 1, 0
    %v694 = vsel %vm686, 1, 0
    %v695 = vsel %vm687, 1, 0
    %v696 = vsel %vm688, 1, 0
    %v697 = vsel %vm689, 1, 0
    %v698 = vcvt.s32.f32 %v690
    %v699 = vcvt.s32.f32 %v691
    %v700 = vcvt.s32.f32 %v692
    %v701 = vcvt.s32.f32 %v693
    %v702 = vcvt.s32.f32 %v694
    %v703 = vcvt.s32.f32 %v695
    %v704 = vcvt.s32.f32 %v696
    %v705 = vcvt.s32.f32 %v697
    %v707 = vsel %vm234, %v675, 0
    %709 = vmatprep.subr.mxu0 0.0
    %710 = vmatpush1.msra.mxu0 %v121
    %711 = vmatprep.subr.mxu0 0.0
    %712 = vmatpush1.msra.mxu0 %v122
    %713 = vmatprep.subr.mxu0 0.0
    %714 = vmatpush1.msra.mxu0 0.0
    %715 = vmatprep.subr.mxu0 0.0
    %716 = vmatpush1.msra.mxu0 0.0
    %717 = vmatprep.subr.mxu0 0.0
    %718 = vmatpush1.msra.mxu0 0.0
    %719 = vmatprep.subr.mxu0 0.0
    %720 = vmatpush1.msra.mxu0 0.0
    %721 = vmatprep.subr.mxu0 0.0
    %722 = vmatpush1.msra.mxu0 0.0
    %723 = vmatprep.subr.mxu0 0.0
    %724 = vmatpush1.msra.mxu0 0.0
    %725 = vmatprep.subr.mxu0 0.0
    %726 = vmatpush1.msra.mxu0 0.0
    %727 = vmatprep.subr.mxu0 0.0
    %728 = vmatpush1.msra.mxu0 0.0
    %729 = vmatprep.subr.mxu0 0.0
    %730 = vmatpush1.msra.mxu0 0.0
    %731 = vmatprep.subr.mxu0 0.0
    %732 = vmatpush1.msra.mxu0 0.0
    %733 = vmatprep.subr.mxu0 0.0
    %734 = vmatpush1.msra.mxu0 0.0
    %735 = vmatprep.subr.mxu0 0.0
    %736 = vmatpush1.msra.mxu0 0.0
    %737 = vmatprep.subr.mxu0 0.0
    %738 = vmatpush1.msra.mxu0 0.0
    %739 = vmatprep.subr.mxu0 0.0
    %740 = vmatpush1.msra.mxu0 0.0
    %741 = vmatprep.subr.mxu0 0.0
    %742 = vmatpush1.msra.mxu0 0.0
    %743 = vmatprep.subr.mxu0 0.0
    %744 = vmatpush1.msra.mxu0 0.0
    %745 = vmatprep.subr.mxu0 0.0
    %746 = vmatpush1.msra.mxu0 0.0
    %747 = vmatprep.subr.mxu0 0.0
    %748 = vmatpush1.msra.mxu0 0.0
    %749 = vmatprep.subr.mxu0 0.0
    %750 = vmatpush1.msra.mxu0 0.0
    %751 = vmatprep.subr.mxu0 0.0
    %752 = vmatpush1.msra.mxu0 0.0
    %753 = vmatprep.subr.mxu0 0.0
    %754 = vmatpush1.msra.mxu0 0.0
    %755 = vmatprep.subr.mxu0 0.0
    %756 = vmatpush1.msra.mxu0 0.0
    %757 = vmatprep.subr.mxu0 0.0
    %758 = vmatpush1.msra.mxu0 0.0
    %759 = vmatprep.subr.mxu0 0.0
    %760 = vmatpush1.msra.mxu0 0.0
    %761 = vmatprep.subr.mxu0 0.0
    %762 = vmatpush1.msra.mxu0 0.0
    %763 = vmatprep.subr.mxu0 0.0
    %764 = vmatpush1.msra.mxu0 0.0
    %765 = vmatprep.subr.mxu0 0.0
    %766 = vmatpush1.msra.mxu0 0.0
    %767 = vmatprep.subr.mxu0 0.0
    %768 = vmatpush1.msra.mxu0 0.0
    %769 = vmatprep.subr.mxu0 0.0
    %770 = vmatpush1.msra.mxu0 0.0
    %771 = vmatprep.subr.mxu0 0.0
    %772 = vmatpush1.msra.mxu0 0.0
    %773 = vmatprep.mubr.f32.mxu0 0.0
    %774 = vmatmul.mubr.f32.gmra.mrb[0].mxu0 %v707
    %v775 = vpop.f32.mrb[0].mxu0
    %v776 = vadd.f32 0.0, %v775
    %v777 = vpop.f32.mrb[0].mxu0
    %778 = vdwg.mxu0
    %v780 = vsel %vm354, %v776, 0
    %782 = vmatprep.subr.mxu0 0.0
    %783 = vmatpush1.msra.mxu0 %v698
    %784 = vmatprep.subr.mxu0 0.0
    %785 = vmatpush1.msra.mxu0 %v699
    %786 = vmatprep.subr.mxu0 0.0
    %787 = vmatpush1.msra.mxu0 %v700
    %788 = vmatprep.subr.mxu0 0.0
    %789 = vmatpush1.msra.mxu0 %v701
    %790 = vmatprep.subr.mxu0 0.0
    %791 = vmatpush1.msra.mxu0 %v702
    %792 = vmatprep.subr.mxu0 0.0
    %793 = vmatpush1.msra.mxu0 %v703
    %794 = vmatprep.subr.mxu0 0.0
    %795 = vmatpush1.msra.mxu0 %v704
    %796 = vmatprep.subr.mxu0 0.0
    %797 = vmatpush1.msra.mxu0 %v705
    %798 = vmatprep.subr.mxu0 0.0
    %799 = vmatpush1.msra.mxu0 0.0
    %800 = vmatprep.subr.mxu0 0.0
    %801 = vmatpush1.msra.mxu0 0.0
    %802 = vmatprep.subr.mxu0 0.0
    %803 = vmatpush1.msra.mxu0 0.0
    %804 = vmatprep.subr.mxu0 0.0
    %805 = vmatpush1.msra.mxu0 0.0
    %806 = vmatprep.subr.mxu0 0.0
    %807 = vmatpush1.msra.mxu0 0.0
    %808 = vmatprep.subr.mxu0 0.0
    %809 = vmatpush1.msra.mxu0 0.0
    %810 = vmatprep.subr.mxu0 0.0
    %811 = vmatpush1.msra.mxu0 0.0
    %812 = vmatprep.subr.mxu0 0.0
    %813 = vmatpush1.msra.mxu0 0.0
    %814 = vmatprep.subr.mxu0 0.0
    %815 = vmatpush1.msra.mxu0 0.0
    %816 = vmatprep.subr.mxu0 0.0
    %817 = vmatpush1.msra.mxu0 0.0
    %818 = vmatprep.subr.mxu0 0.0
    %819 = vmatpush1.msra.mxu0 0.0
    %820 = vmatprep.subr.mxu0 0.0
    %821 = vmatpush1.msra.mxu0 0.0
    %822 = vmatprep.subr.mxu0 0.0
    %823 = vmatpush1.msra.mxu0 0.0
    %824 = vmatprep.subr.mxu0 0.0
    %825 = vmatpush1.msra.mxu0 0.0
    %826 = vmatprep.subr.mxu0 0.0
    %827 = vmatpush1.msra.mxu0 0.0
    %828 = vmatprep.subr.mxu0 0.0
    %829 = vmatpush1.msra.mxu0 0.0
    %830 = vmatprep.subr.mxu0 0.0
    %831 = vmatpush1.msra.mxu0 0.0
    %832 = vmatprep.subr.mxu0 0.0
    %833 = vmatpush1.msra.mxu0 0.0
    %834 = vmatprep.subr.mxu0 0.0
    %835 = vmatpush1.msra.mxu0 0.0
    %836 = vmatprep.subr.mxu0 0.0
    %837 = vmatpush1.msra.mxu0 0.0
    %838 = vmatprep.subr.mxu0 0.0
    %839 = vmatpush1.msra.mxu0 0.0
    %840 = vmatprep.subr.mxu0 0.0
    %841 = vmatpush1.msra.mxu0 0.0
    %842 = vmatprep.subr.mxu0 0.0
    %843 = vmatpush1.msra.mxu0 0.0
    %844 = vmatprep.subr.mxu0 0.0
    %845 = vmatpush1.msra.mxu0 0.0
    %846 = vmatprep.mubr.f32.mxu0 0.0
    %847 = vmatmul.mubr.f32.gmra.mrb[0].mxu0 %v780
    %v848 = vpop.f32.mrb[0].mxu0
    %v849 = vadd.f32 0.0, %v848
    %v850 = vpop.f32.mrb[0].mxu0
    %851 = vdwg.mxu0
    %v852 = vstv %s670
    %vm853 = vcmp.le.f32.partialorder %v849, %v852
    %v854 = vsel %vm853, 0.004, -0.003
    %s855 = smul.u32 %s646, 8
    %s856 = scalar_lea.vmem [#allocation2], %s855
    %857 = vst.msk [vmem:[%s856] sm:$0x1f] %vm211, %v854
    %v858 = vld [vmem:[%s3] sm:$0x1f]
    %v859 = vld [vmem:[%s3 + $0x8] sm:$0x1f]
    %v860 = vld [vmem:[%s3 + $0x10] sm:$0x1f]
    %v861 = vld [vmem:[%s3 + $0x18] sm:$0x1f]
    %v862 = vld [vmem:[%s3 + $0x20] sm:$0x1f]
    %v863 = vld [vmem:[%s3 + $0x28] sm:$0x1f]
    %v864 = vld [vmem:[%s3 + $0x30] sm:$0x1f]
    %v865 = vld [vmem:[%s3 + $0x38] sm:$0x1f]
    %v866 = vld [vmem:[#allocation2] sm:$0x1f]
    %v867 = vld [vmem:[#allocation2 + $0x8] sm:$0x1f]
    %v868 = vld [vmem:[#allocation2 + $0x10] sm:$0x1f]
    %v869 = vld [vmem:[#allocation2 + $0x18] sm:$0x1f]
    %v870 = vld [vmem:[#allocation2 + $0x20] sm:$0x1f]
    %v871 = vld [vmem:[#allocation2 + $0x28] sm:$0x1f]
    %v872 = vld [vmem:[#allocation2 + $0x30] sm:$0x1f]
    %v873 = vld [vmem:[#allocation2 + $0x38] sm:$0x1f]
    %v874 = vsub.f32 1.0, %v858
    %v875 = vsub.f32 1.0, %v859
    %v876 = vsub.f32 1.0, %v860
    %v877 = vsub.f32 1.0, %v861
    %v878 = vsub.f32 1.0, %v862
    %v879 = vsub.f32 1.0, %v863
    %v880 = vsub.f32 1.0, %v864
    %v881 = vsub.f32 1.0, %v865
    %v882 = vmul.f32 %v858, %v874
    %v883 = vmul.f32 %v859, %v875
    %v884 = vmul.f32 %v860, %v876
    %v885 = vmul.f32 %v861, %v877
    %v886 = vmul.f32 %v862, %v878
    %v887 = vmul.f32 %v863, %v879
    %v888 = vmul.f32 %v864, %v880
    %v889 = vmul.f32 %v865, %v881
    %v890 = vmul.f32 %v866, %v882
    %v891 = vmul.f32 %v867, %v883
    %v892 = vmul.f32 %v868, %v884
    %v893 = vmul.f32 %v869, %v885
    %v894 = vmul.f32 %v870, %v886
    %v895 = vmul.f32 %v871, %v887
    %v896 = vmul.f32 %v872, %v888
    %v897 = vmul.f32 %v873, %v889
    %v898 = vadd.f32 %v858, %v890
    %v899 = vadd.f32 %v859, %v891
    %v900 = vadd.f32 %v860, %v892
    %v901 = vadd.f32 %v861, %v893
    %v902 = vadd.f32 %v862, %v894
    %v903 = vadd.f32 %v863, %v895
    %v904 = vadd.f32 %v864, %v896
    %v905 = vadd.f32 %v865, %v897
    %v906 = vmax.f32 %v898, 0.0
    %v907 = vmax.f32 %v899, 0.0
    %v908 = vmax.f32 %v900, 0.0
    %v909 = vmax.f32 %v901, 0.0
    %v910 = vmax.f32 %v902, 0.0
    %v911 = vmax.f32 %v903, 0.0
    %v912 = vmax.f32 %v904, 0.0
    %v913 = vmax.f32 %v905, 0.0
    %v914 = vmin.f32 %v906, 1.0
    %v915 = vmin.f32 %v907, 1.0
    %v916 = vmin.f32 %v908, 1.0
    %v917 = vmin.f32 %v909, 1.0
    %v918 = vmin.f32 %v910, 1.0
    %v919 = vmin.f32 %v911, 1.0
    %v920 = vmin.f32 %v912, 1.0
    %v921 = vmin.f32 %v913, 1.0
    %922 = vst.msk [vmem:[%s5] sm:$0x1f] %vm211, %v914
    %923 = vst.msk [vmem:[%s5 + $0x8] sm:$0x1f] %vm211, %v915
    %924 = vst.msk [vmem:[%s5 + $0x10] sm:$0x1f] %vm211, %v916
    %925 = vst.msk [vmem:[%s5 + $0x18] sm:$0x1f] %vm211, %v917
    %926 = vst.msk [vmem:[%s5 + $0x20] sm:$0x1f] %vm211, %v918
    %927 = vst.msk [vmem:[%s5 + $0x28] sm:$0x1f] %vm211, %v919
    %928 = vst.msk [vmem:[%s5 + $0x30] sm:$0x1f] %vm211, %v920
    %929 = vst.msk [vmem:[%s5 + $0x38] sm:$0x1f] %vm211, %v921
    // Predicated region
    $region26: #{tpu_custom_call.1} parent=1 // pred_check
      _
    $region27: #{tpu_custom_call.1} parent=1 // pred_check_branch
      %931 = sbr.rel (0) target = $region29
    $region28: #{tpu_custom_call.1} parent=1 // pred_region
      _
    $region29: #{tpu_custom_call.1} parent=1 // pred_fallthru
      _
    // Predicated region
    $region30: #{tpu_custom_call.1} parent=1 // pred_check
      _
    $region31: #{tpu_custom_call.1} parent=1 // pred_check_branch
      %933 = sbr.rel (0) target = $region33
    $region32: #{tpu_custom_call.1} parent=1 // pred_region
      _
    $region33: #{tpu_custom_call.1} parent=1 // pred_fallthru
      _
    %934 = vsyncpa [#allocation6], 1
    %935 = vsyncpa [#allocation8], 1

</llo_original>
